<compile_context>
chip_gen: v5e
topology: v5e:2x2
jax: 0.10.0
libtpu: 0.0.40
codegen_flags: <defaults>
</compile_context>

<pallas_src>
import numpy as np
import jax
import jax.numpy as jnp
from jax.experimental import pallas as pl
from jax.experimental.pallas import tpu as pltpu

# LeNet architecture constants (3x32x32 input -> backbone output 16*5*5 = 400).
K = 5                      # conv kernel size
C0, OC1, OC2 = 3, 6, 16    # channels: input, conv1 out, conv2 out
H0 = W0 = 32               # input spatial size
HO1 = H0 - K + 1           # 28: conv1 output height/width
H1 = W1 = HO1 // 2         # 14: after 2x2 avg pool
HO2 = H1 - K + 1           # 10: conv2 output height/width
H2 = W2 = HO2 // 2         # 5:  after 2x2 avg pool
FC1, FC2 = 120, 84
LANE = 128                 # pad every feature (lane) dim to the vreg/MXU width
MAX_BLOCK = 8              # max images per grid step


def _tree_sum(parts):
    """Balanced-tree sum so the partial GEMMs stay independent (MXU overlap)."""
    parts = list(parts)
    while len(parts) > 1:
        nxt = [parts[i] + parts[i + 1] for i in range(0, len(parts) - 1, 2)]
        if len(parts) % 2:
            nxt.append(parts[-1])
        parts = nxt
    return parts[0]


# ----------------------------------------------------------------------------
# The single fused kernel.  One grid step == one block of `nb` images.
#   x_ref   : (H0*nb, LANE)    rows = (h, b_local), lanes = (w*C0+c), 0-padded
#   w_ref   : (17, LANE, LANE) [w1b(5) | w2b(5) | wfc1(5) | wfc2 | wfc3]
#   b_ref   : (5, LANE)        [conv1, conv2, fc1, fc2, fc3] biases (padded)
#   ph1_ref : (H1*nb, HO1*nb)  kron(vertical-pool-1, I_nb)
#   ph2_ref : (H2*nb, HO2*nb)  kron(vertical-pool-2, I_nb)
#   o_ref   : (1, nb, LANE)    lane-dense padded logits for the block
# ----------------------------------------------------------------------------
def _lenet_kernel(x_ref, w_ref, b_ref, ph1_ref, ph2_ref, o_ref):
    f32 = jnp.float32
    nb = o_ref.shape[1]

    # conv1 (+ horizontal half of the 2x2 avg-pool folded into w_ref[0..K-1]).
    # rows are h-major, so tap kh is the contiguous row window [kh*nb, ...).
    taps1 = [jnp.dot(x_ref[pl.ds(kh * nb, HO1 * nb), :], w_ref[kh],
                     preferred_element_type=f32) for kh in range(K)]
    acc1 = _tree_sum(taps1)                                    # (HO1*nb, LANE)
    # vertical pool half (one GEMM with kron(pool, I_nb)) + conv1 bias.
    y1 = jnp.dot(ph1_ref[...], acc1, preferred_element_type=f32) + b_ref[0:1, :]

    # conv2 (+ horizontal pool half folded into w_ref[K..2K-1]).
    taps2 = [jnp.dot(y1[kh * nb:(kh + HO2) * nb, :], w_ref[K + kh],
                     preferred_element_type=f32) for kh in range(K)]
    acc2 = _tree_sum(taps2)                                    # (HO2*nb, LANE)
    # vertical pool half + conv2 bias -> rows = (pooled_h, b_local).
    t = jnp.dot(ph2_ref[...], acc2, preferred_element_type=f32) + b_ref[1:2, :]

    # fc1: contraction over the H2 pooled rows; each partial GEMM has M = nb
    # (the NCHW flatten permutation is baked into the wfc1 row order).
    parts = [jnp.dot(t[q * nb:(q + 1) * nb, :], w_ref[2 * K + q],
                     preferred_element_type=f32) for q in range(H2)]
    h1 = jnp.maximum(_tree_sum(parts) + b_ref[2:3, :], 0.0)    # ReLU

    h2 = jnp.maximum(jnp.dot(h1, w_ref[2 * K + H2], preferred_element_type=f32)
                     + b_ref[3:4, :], 0.0)                      # ReLU
    out = jnp.dot(h2, w_ref[2 * K + H2 + 1], preferred_element_type=f32) \
        + b_ref[4:5, :]
    o_ref[0] = out.astype(o_ref.dtype)                          # (nb, LANE)


# ----------------------------------------------------------------------------
# One-time weight repacking (plain JAX / numpy, outside the kernel).
# ----------------------------------------------------------------------------
def _wpool_conv_coupling(w_in, k):
    # A[w, wp, kw] = 0.5 iff input column w is tap kw of conv output column
    # 2*wp or 2*wp+1 (conv along W folded with the 2x1 horizontal avg-pool).
    wo = w_in - k + 1
    wp = wo // 2
    d = (np.arange(w_in)[:, None, None]
         - np.arange(k)[None, None, :]
         - 2 * np.arange(wp)[None, :, None])
    return (0.5 * ((d == 0) | (d == 1))).astype(np.float32)


def _conv_poolw_weight(w_oihw, w_in):
    # Fold Conv2d (VALID, stride 1) along W with the horizontal pool half into
    # per-kh GEMM weights: (K, w_in*C, (Wo//2)*OC), rows=(w,c), cols=(wp,oc).
    oc, c, k, _ = w_oihw.shape
    a = _wpool_conv_coupling(w_in, k)                  # (w_in, wp, k)
    w_t = jnp.transpose(w_oihw, (2, 3, 1, 0))          # (kh, kw, c, oc)
    m = jnp.einsum('ipk,hkco->hicpo', a, w_t)          # (kh, w_in, c, wp, oc)
    wp = (w_in - k + 1) // 2
    return m.reshape(k, w_in * c, wp * oc)


def _hpool_matrix(hp_out):
    # (hp_out, 2*hp_out): m[q, 2q] = m[q, 2q+1] = 0.5  (vertical pool half).
    m = np.zeros((hp_out, 2 * hp_out), np.float32)
    for q in range(hp_out):
        m[q, 2 * q] = 0.5
        m[q, 2 * q + 1] = 0.5
    return jnp.asarray(m)


def _pad_last2(a, rows, cols):
    r, c = a.shape[-2:]
    pad = [(0, 0)] * (a.ndim - 2) + [(0, rows - r), (0, cols - c)]
    return jnp.pad(a, pad)


def prepare_pallas_operands(params):
    """Repack torch-convention LeNet params into consolidated GEMM operands."""
    p = params
    w1b = _pad_last2(_conv_poolw_weight(p["conv1_w"], W0), LANE, LANE)  # (5,128,128)
    w2b = _pad_last2(_conv_poolw_weight(p["conv2_w"], W1), LANE, LANE)  # (5,128,128)
    # torch fc1 weight is (out, in) with in-features flattened NCHW (c,h,w);
    # reorder to per-h blocks of (w*OC2 + c, out) so it consumes NHWC rows.
    wfc1 = (p["fc1_w"].reshape(FC1, OC2, H2, W2)   # (j, c, h, w)
            .transpose(2, 3, 1, 0)                 # (h, w, c, j)
            .reshape(H2, W2 * OC2, FC1))           # (h, w*OC2+c, j)
    wfc1 = _pad_last2(wfc1, LANE, LANE)                                  # (5,128,128)
    wfc2 = _pad_last2(p["fc2_w"].T, LANE, LANE)[None]                    # (1,128,128)
    wfc3 = _pad_last2(p["fc3_w"].T, LANE, LANE)[None]                    # (1,128,128) lane-dense
    wstack = jnp.concatenate([w1b, w2b, wfc1, wfc2, wfc3], axis=0)       # (17,128,128)

    b1t = _pad_last2(jnp.tile(p["conv1_b"], W1)[None, :], 1, LANE)       # (1,128)
    b2t = _pad_last2(jnp.tile(p["conv2_b"], W2)[None, :], 1, LANE)       # (1,128)
    bfc1 = _pad_last2(p["fc1_b"][None, :], 1, LANE)
    bfc2 = _pad_last2(p["fc2_b"][None, :], 1, LANE)
    bfc3 = _pad_last2(p["fc3_b"][None, :], 1, LANE)
    bstack = jnp.concatenate([b1t, b2t, bfc1, bfc2, bfc3], axis=0)       # (5,128)

    return dict(wstack=wstack, bstack=bstack,
                ph1=_hpool_matrix(H1), ph2=_hpool_matrix(H2))


def _choose_block(n, max_nb=MAX_BLOCK):
    """Images per grid step: amortize step overhead but keep >= 2 grid steps."""
    if n <= 1:
        return 1
    return max(1, min(max_nb, (n + 1) // 2))


def lenet_forward_pallas(x_nchw, ops, *, num_classes):
    n = x_nchw.shape[0]
    nb = _choose_block(n)
    g = pl.cdiv(n, nb)
    n_pad = g * nb
    if n_pad != n:
        x_nchw = jnp.pad(x_nchw, ((0, n_pad - n), (0, 0), (0, 0), (0, 0)))

    # One-time layout change: NCHW -> blocks of rows=(h, b_local), lanes=(w,c),
    # zero-padded to 128 lanes.  This is the only out-of-kernel layout op.
    x2d = (x_nchw.reshape(g, nb, C0, H0, W0)
           .transpose(0, 3, 1, 4, 2)               # (g, h, b, w, c)
           .reshape(g * H0 * nb, W0 * C0))
    x2d = jnp.pad(x2d, ((0, 0), (0, LANE - W0 * C0)))

    # Vertical 2x1 avg-pool operators for a whole block of nb images.
    eye = jnp.eye(nb, dtype=jnp.float32)
    ph1b = jnp.kron(ops["ph1"], eye)               # (H1*nb, HO1*nb)
    ph2b = jnp.kron(ops["ph2"], eye)               # (H2*nb, HO2*nb)

    out = pl.pallas_call(
        _lenet_kernel,
        out_shape=jax.ShapeDtypeStruct((g, nb, LANE), jnp.float32),
        grid=(g,),
        in_specs=[
            pl.BlockSpec((H0 * nb, LANE), lambda i: (i, 0)),       # per-block x
            pl.BlockSpec(ops["wstack"].shape, lambda i: (0, 0, 0)),  # weights: once
            pl.BlockSpec(ops["bstack"].shape, lambda i: (0, 0)),
            pl.BlockSpec(ph1b.shape, lambda i: (0, 0)),
            pl.BlockSpec(ph2b.shape, lambda i: (0, 0)),
        ],
        out_specs=pl.BlockSpec((1, nb, LANE), lambda i: (i, 0, 0)),
        compiler_params=pltpu.CompilerParams(
            dimension_semantics=("parallel",)),
    )(x2d, ops["wstack"], ops["bstack"], ph1b, ph2b)

    return out.reshape(g * nb, LANE)[:n, :num_classes]


# ----------------------------------------------------------------------------
# Pure-JAX reference mirroring the PyTorch module exactly (NCHW, torch layout).
# ----------------------------------------------------------------------------
def lenet_reference(x, p):
    def conv(x, w, b):
        y = jax.lax.conv_general_dilated(
            x, w, window_strides=(1, 1), padding="VALID",
            dimension_numbers=("NCHW", "OIHW", "NCHW"))
        return y + b[None, :, None, None]

    def pool(x):
        n, c, h, w = x.shape
        return x.reshape(n, c, h // 2, 2, w // 2, 2).mean(axis=(3, 5))

    y = pool(conv(x, p["conv1_w"], p["conv1_b"]))
    y = pool(conv(y, p["conv2_w"], p["conv2_b"]))
    y = y.reshape(x.shape[0], -1)                       # torch.flatten(x, 1)
    y = jnp.maximum(y @ p["fc1_w"].T + p["fc1_b"], 0.0)
    y = jnp.maximum(y @ p["fc2_w"].T + p["fc2_b"], 0.0)
    return y @ p["fc3_w"].T + p["fc3_b"]


def make_params(key, num_classes=10):
    ks = jax.random.split(key, 10)
    s = 0.1
    return {
        "conv1_w": s * jax.random.normal(ks[0], (OC1, C0, K, K), jnp.float32),
        "conv1_b": s * jax.random.normal(ks[1], (OC1,), jnp.float32),
        "conv2_w": s * jax.random.normal(ks[2], (OC2, OC1, K, K), jnp.float32),
        "conv2_b": s * jax.random.normal(ks[3], (OC2,), jnp.float32),
        # torch Linear convention: weight is (out_features, in_features)
        "fc1_w": s * jax.random.normal(ks[4], (FC1, H2 * W2 * OC2), jnp.float32),
        "fc1_b": s * jax.random.normal(ks[5], (FC1,), jnp.float32),
        "fc2_w": s * jax.random.normal(ks[6], (FC2, FC1), jnp.float32),
        "fc2_b": s * jax.random.normal(ks[7], (FC2,), jnp.float32),
        "fc3_w": s * jax.random.normal(ks[8], (num_classes, FC2), jnp.float32),
        "fc3_b": s * jax.random.normal(ks[9], (num_classes,), jnp.float32),
    }


if __name__ == "__main__":
    key = jax.random.PRNGKey(0)
    k_x, k_x2, k_p = jax.random.split(key, 3)
    num_classes = 10
    params = make_params(k_p, num_classes)
    ops = prepare_pallas_operands(params)          # one-time weight repack
    fwd = jax.jit(lenet_forward_pallas, static_argnames=("num_classes",))

    # Small-batch check (block size 1, 2 grid steps).
    x = jax.random.normal(k_x, (2, C0, H0, W0), jnp.float32)
    out = jax.block_until_ready(fwd(x, ops, num_classes=num_classes))
    ref = jax.block_until_ready(lenet_reference(x, params))
    assert out.shape == (2, num_classes), out.shape
    err = float(jnp.max(jnp.abs(out - ref)))
    assert jnp.allclose(out, ref, atol=1e-3, rtol=1e-3), ("mismatch small", err)

    # Larger / ragged batch check (block size 8, batch padding, 3 grid steps).
    x2 = jax.random.normal(k_x2, (19, C0, H0, W0), jnp.float32)
    out2 = jax.block_until_ready(fwd(x2, ops, num_classes=num_classes))
    ref2 = jax.block_until_ready(lenet_reference(x2, params))
    assert out2.shape == (19, num_classes), out2.shape
    err2 = float(jnp.max(jnp.abs(out2 - ref2)))
    assert jnp.allclose(out2, ref2, atol=1e-3, rtol=1e-3), ("mismatch big", err2)

    print("KERNEL_OK")
</pallas_src>

<mosaic_0001>
module attributes {stable_mosaic.version = 11 : i64} {
  func.func @_lenet_kernel(%arg0: i32, %arg1: memref<32x128xf32, #tpu.memory_space<vmem>>, %arg2: memref<17x128x128xf32, #tpu.memory_space<vmem>>, %arg3: memref<5x128xf32, #tpu.memory_space<vmem>>, %arg4: memref<14x28xf32, #tpu.memory_space<vmem>>, %arg5: memref<5x10xf32, #tpu.memory_space<vmem>>, %arg6: memref<1x1x128xf32, #tpu.memory_space<vmem>>) attributes {dimension_semantics = [#tpu.dimension_semantics<parallel>], iteration_bounds = array<i64: 2>, scalar_prefetch = 0 : i64, scratch_operands = 0 : i64, tpu.core_type = #tpu.core_type<tc>, window_params = [{transform_indices = @transform_0, window_bounds = array<i64: 32, 128>}, {pipeline_mode = #tpu.pipeline_mode<synchronous>, transform_indices = @transform_1, window_bounds = array<i64: 17, 128, 128>}, {pipeline_mode = #tpu.pipeline_mode<synchronous>, transform_indices = @transform_2, window_bounds = array<i64: 5, 128>}, {pipeline_mode = #tpu.pipeline_mode<synchronous>, transform_indices = @transform_3, window_bounds = array<i64: 14, 28>}, {pipeline_mode = #tpu.pipeline_mode<synchronous>, transform_indices = @transform_4, window_bounds = array<i64: 5, 10>}, {transform_indices = @transform_5, window_bounds = array<i64: 1, 1, 128>}]} {
    %c0 = arith.constant 0 : index
    %c0_0 = arith.constant 0 : index
    %0 = vector.load %arg1[%c0, %c0_0] : memref<32x128xf32, #tpu.memory_space<vmem>>, vector<28x128xf32>
    %c0_1 = arith.constant 0 : index
    %c0_2 = arith.constant 0 : index
    %c0_3 = arith.constant 0 : index
    %1 = vector.load %arg2[%c0_1, %c0_2, %c0_3] : memref<17x128x128xf32, #tpu.memory_space<vmem>>, vector<1x128x128xf32>
    %2 = vector.shape_cast %1 : vector<1x128x128xf32> to vector<128x128xf32>
    %cst = arith.constant dense<0.000000e+00> : vector<28x128xf32>
    %3 = tpu.matmul %0, %2, %cst {dimension_numbers = #tpu.dot_dimension_numbers<[1], [0], [0], [1], [0, 0, 1, 1], [], []>} : vector<28x128xf32>, vector<128x128xf32>, vector<28x128xf32> -> vector<28x128xf32>
    %c1 = arith.constant 1 : index
    %c0_4 = arith.constant 0 : index
    %4 = vector.load %arg1[%c1, %c0_4] : memref<32x128xf32, #tpu.memory_space<vmem>>, vector<28x128xf32>
    %c1_5 = arith.constant 1 : index
    %c0_6 = arith.constant 0 : index
    %c0_7 = arith.constant 0 : index
    %5 = vector.load %arg2[%c1_5, %c0_6, %c0_7] : memref<17x128x128xf32, #tpu.memory_space<vmem>>, vector<1x128x128xf32>
    %6 = vector.shape_cast %5 : vector<1x128x128xf32> to vector<128x128xf32>
    %cst_8 = arith.constant dense<0.000000e+00> : vector<28x128xf32>
    %7 = tpu.matmul %4, %6, %cst_8 {dimension_numbers = #tpu.dot_dimension_numbers<[1], [0], [0], [1], [0, 0, 1, 1], [], []>} : vector<28x128xf32>, vector<128x128xf32>, vector<28x128xf32> -> vector<28x128xf32>
    %c2 = arith.constant 2 : index
    %c0_9 = arith.constant 0 : index
    %8 = vector.load %arg1[%c2, %c0_9] : memref<32x128xf32, #tpu.memory_space<vmem>>, vector<28x128xf32>
    %c2_10 = arith.constant 2 : index
    %c0_11 = arith.constant 0 : index
    %c0_12 = arith.constant 0 : index
    %9 = vector.load %arg2[%c2_10, %c0_11, %c0_12] : memref<17x128x128xf32, #tpu.memory_space<vmem>>, vector<1x128x128xf32>
    %10 = vector.shape_cast %9 : vector<1x128x128xf32> to vector<128x128xf32>
    %cst_13 = arith.constant dense<0.000000e+00> : vector<28x128xf32>
    %11 = tpu.matmul %8, %10, %cst_13 {dimension_numbers = #tpu.dot_dimension_numbers<[1], [0], [0], [1], [0, 0, 1, 1], [], []>} : vector<28x128xf32>, vector<128x128xf32>, vector<28x128xf32> -> vector<28x128xf32>
    %c3 = arith.constant 3 : index
    %c0_14 = arith.constant 0 : index
    %12 = vector.load %arg1[%c3, %c0_14] : memref<32x128xf32, #tpu.memory_space<vmem>>, vector<28x128xf32>
    %c3_15 = arith.constant 3 : index
    %c0_16 = arith.constant 0 : index
    %c0_17 = arith.constant 0 : index
    %13 = vector.load %arg2[%c3_15, %c0_16, %c0_17] : memref<17x128x128xf32, #tpu.memory_space<vmem>>, vector<1x128x128xf32>
    %14 = vector.shape_cast %13 : vector<1x128x128xf32> to vector<128x128xf32>
    %cst_18 = arith.constant dense<0.000000e+00> : vector<28x128xf32>
    %15 = tpu.matmul %12, %14, %cst_18 {dimension_numbers = #tpu.dot_dimension_numbers<[1], [0], [0], [1], [0, 0, 1, 1], [], []>} : vector<28x128xf32>, vector<128x128xf32>, vector<28x128xf32> -> vector<28x128xf32>
    %c4 = arith.constant 4 : index
    %c0_19 = arith.constant 0 : index
    %16 = vector.load %arg1[%c4, %c0_19] : memref<32x128xf32, #tpu.memory_space<vmem>>, vector<28x128xf32>
    %c4_20 = arith.constant 4 : index
    %c0_21 = arith.constant 0 : index
    %c0_22 = arith.constant 0 : index
    %17 = vector.load %arg2[%c4_20, %c0_21, %c0_22] : memref<17x128x128xf32, #tpu.memory_space<vmem>>, vector<1x128x128xf32>
    %18 = vector.shape_cast %17 : vector<1x128x128xf32> to vector<128x128xf32>
    %cst_23 = arith.constant dense<0.000000e+00> : vector<28x128xf32>
    %19 = tpu.matmul %16, %18, %cst_23 {dimension_numbers = #tpu.dot_dimension_numbers<[1], [0], [0], [1], [0, 0, 1, 1], [], []>} : vector<28x128xf32>, vector<128x128xf32>, vector<28x128xf32> -> vector<28x128xf32>
    %20 = arith.addf %3, %7 : vector<28x128xf32>
    %21 = arith.addf %11, %15 : vector<28x128xf32>
    %22 = arith.addf %20, %21 : vector<28x128xf32>
    %23 = arith.addf %22, %19 : vector<28x128xf32>
    %c0_24 = arith.constant 0 : index
    %c0_25 = arith.constant 0 : index
    %24 = vector.load %arg4[%c0_24, %c0_25] : memref<14x28xf32, #tpu.memory_space<vmem>>, vector<14x28xf32>
    %cst_26 = arith.constant dense<0.000000e+00> : vector<14x128xf32>
    %25 = tpu.matmul %24, %23, %cst_26 {dimension_numbers = #tpu.dot_dimension_numbers<[1], [0], [0], [1], [0, 0, 1, 1], [], []>} : vector<14x28xf32>, vector<28x128xf32>, vector<14x128xf32> -> vector<14x128xf32>
    %c0_27 = arith.constant 0 : index
    %c0_28 = arith.constant 0 : index
    %26 = vector.load %arg3[%c0_27, %c0_28] : memref<5x128xf32, #tpu.memory_space<vmem>>, vector<1x128xf32>
    %27 = vector.broadcast %26 : vector<1x128xf32> to vector<14x128xf32>
    %28 = arith.addf %25, %27 : vector<14x128xf32>
    %29 = vector.extract_strided_slice %28 {offsets = [0, 0], sizes = [10, 128], strides = [1, 1]} : vector<14x128xf32> to vector<10x128xf32>
    %c5 = arith.constant 5 : index
    %c0_29 = arith.constant 0 : index
    %c0_30 = arith.constant 0 : index
    %30 = vector.load %arg2[%c5, %c0_29, %c0_30] : memref<17x128x128xf32, #tpu.memory_space<vmem>>, vector<1x128x128xf32>
    %31 = vector.shape_cast %30 : vector<1x128x128xf32> to vector<128x128xf32>
    %cst_31 = arith.constant dense<0.000000e+00> : vector<10x128xf32>
    %32 = tpu.matmul %29, %31, %cst_31 {dimension_numbers = #tpu.dot_dimension_numbers<[1], [0], [0], [1], [0, 0, 1, 1], [], []>} : vector<10x128xf32>, vector<128x128xf32>, vector<10x128xf32> -> vector<10x128xf32>
    %33 = vector.extract_strided_slice %28 {offsets = [1, 0], sizes = [10, 128], strides = [1, 1]} : vector<14x128xf32> to vector<10x128xf32>
    %c6 = arith.constant 6 : index
    %c0_32 = arith.constant 0 : index
    %c0_33 = arith.constant 0 : index
    %34 = vector.load %arg2[%c6, %c0_32, %c0_33] : memref<17x128x128xf32, #tpu.memory_space<vmem>>, vector<1x128x128xf32>
    %35 = vector.shape_cast %34 : vector<1x128x128xf32> to vector<128x128xf32>
    %cst_34 = arith.constant dense<0.000000e+00> : vector<10x128xf32>
    %36 = tpu.matmul %33, %35, %cst_34 {dimension_numbers = #tpu.dot_dimension_numbers<[1], [0], [0], [1], [0, 0, 1, 1], [], []>} : vector<10x128xf32>, vector<128x128xf32>, vector<10x128xf32> -> vector<10x128xf32>
    %37 = vector.extract_strided_slice %28 {offsets = [2, 0], sizes = [10, 128], strides = [1, 1]} : vector<14x128xf32> to vector<10x128xf32>
    %c7 = arith.constant 7 : index
    %c0_35 = arith.constant 0 : index
    %c0_36 = arith.constant 0 : index
    %38 = vector.load %arg2[%c7, %c0_35, %c0_36] : memref<17x128x128xf32, #tpu.memory_space<vmem>>, vector<1x128x128xf32>
    %39 = vector.shape_cast %38 : vector<1x128x128xf32> to vector<128x128xf32>
    %cst_37 = arith.constant dense<0.000000e+00> : vector<10x128xf32>
    %40 = tpu.matmul %37, %39, %cst_37 {dimension_numbers = #tpu.dot_dimension_numbers<[1], [0], [0], [1], [0, 0, 1, 1], [], []>} : vector<10x128xf32>, vector<128x128xf32>, vector<10x128xf32> -> vector<10x128xf32>
    %41 = vector.extract_strided_slice %28 {offsets = [3, 0], sizes = [10, 128], strides = [1, 1]} : vector<14x128xf32> to vector<10x128xf32>
    %c8 = arith.constant 8 : index
    %c0_38 = arith.constant 0 : index
    %c0_39 = arith.constant 0 : index
    %42 = vector.load %arg2[%c8, %c0_38, %c0_39] : memref<17x128x128xf32, #tpu.memory_space<vmem>>, vector<1x128x128xf32>
    %43 = vector.shape_cast %42 : vector<1x128x128xf32> to vector<128x128xf32>
    %cst_40 = arith.constant dense<0.000000e+00> : vector<10x128xf32>
    %44 = tpu.matmul %41, %43, %cst_40 {dimension_numbers = #tpu.dot_dimension_numbers<[1], [0], [0], [1], [0, 0, 1, 1], [], []>} : vector<10x128xf32>, vector<128x128xf32>, vector<10x128xf32> -> vector<10x128xf32>
    %45 = vector.extract_strided_slice %28 {offsets = [4, 0], sizes = [10, 128], strides = [1, 1]} : vector<14x128xf32> to vector<10x128xf32>
    %c9 = arith.constant 9 : index
    %c0_41 = arith.constant 0 : index
    %c0_42 = arith.constant 0 : index
    %46 = vector.load %arg2[%c9, %c0_41, %c0_42] : memref<17x128x128xf32, #tpu.memory_space<vmem>>, vector<1x128x128xf32>
    %47 = vector.shape_cast %46 : vector<1x128x128xf32> to vector<128x128xf32>
    %cst_43 = arith.constant dense<0.000000e+00> : vector<10x128xf32>
    %48 = tpu.matmul %45, %47, %cst_43 {dimension_numbers = #tpu.dot_dimension_numbers<[1], [0], [0], [1], [0, 0, 1, 1], [], []>} : vector<10x128xf32>, vector<128x128xf32>, vector<10x128xf32> -> vector<10x128xf32>
    %49 = arith.addf %32, %36 : vector<10x128xf32>
    %50 = arith.addf %40, %44 : vector<10x128xf32>
    %51 = arith.addf %49, %50 : vector<10x128xf32>
    %52 = arith.addf %51, %48 : vector<10x128xf32>
    %c0_44 = arith.constant 0 : index
    %c0_45 = arith.constant 0 : index
    %53 = vector.load %arg5[%c0_44, %c0_45] : memref<5x10xf32, #tpu.memory_space<vmem>>, vector<5x10xf32>
    %cst_46 = arith.constant dense<0.000000e+00> : vector<5x128xf32>
    %54 = tpu.matmul %53, %52, %cst_46 {dimension_numbers = #tpu.dot_dimension_numbers<[1], [0], [0], [1], [0, 0, 1, 1], [], []>} : vector<5x10xf32>, vector<10x128xf32>, vector<5x128xf32> -> vector<5x128xf32>
    %c1_47 = arith.constant 1 : index
    %c0_48 = arith.constant 0 : index
    %55 = vector.load %arg3[%c1_47, %c0_48] : memref<5x128xf32, #tpu.memory_space<vmem>>, vector<1x128xf32>
    %56 = vector.broadcast %55 : vector<1x128xf32> to vector<5x128xf32>
    %57 = arith.addf %54, %56 : vector<5x128xf32>
    %58 = vector.extract_strided_slice %57 {offsets = [0, 0], sizes = [1, 128], strides = [1, 1]} : vector<5x128xf32> to vector<1x128xf32>
    %c10 = arith.constant 10 : index
    %c0_49 = arith.constant 0 : index
    %c0_50 = arith.constant 0 : index
    %59 = vector.load %arg2[%c10, %c0_49, %c0_50] : memref<17x128x128xf32, #tpu.memory_space<vmem>>, vector<1x128x128xf32>
    %60 = vector.shape_cast %59 : vector<1x128x128xf32> to vector<128x128xf32>
    %cst_51 = arith.constant dense<0.000000e+00> : vector<1x128xf32>
    %61 = tpu.matmul %58, %60, %cst_51 {dimension_numbers = #tpu.dot_dimension_numbers<[1], [0], [0], [1], [0, 0, 1, 1], [], []>} : vector<1x128xf32>, vector<128x128xf32>, vector<1x128xf32> -> vector<1x128xf32>
    %62 = vector.extract_strided_slice %57 {offsets = [1, 0], sizes = [1, 128], strides = [1, 1]} : vector<5x128xf32> to vector<1x128xf32>
    %c11 = arith.constant 11 : index
    %c0_52 = arith.constant 0 : index
    %c0_53 = arith.constant 0 : index
    %63 = vector.load %arg2[%c11, %c0_52, %c0_53] : memref<17x128x128xf32, #tpu.memory_space<vmem>>, vector<1x128x128xf32>
    %64 = vector.shape_cast %63 : vector<1x128x128xf32> to vector<128x128xf32>
    %cst_54 = arith.constant dense<0.000000e+00> : vector<1x128xf32>
    %65 = tpu.matmul %62, %64, %cst_54 {dimension_numbers = #tpu.dot_dimension_numbers<[1], [0], [0], [1], [0, 0, 1, 1], [], []>} : vector<1x128xf32>, vector<128x128xf32>, vector<1x128xf32> -> vector<1x128xf32>
    %66 = vector.extract_strided_slice %57 {offsets = [2, 0], sizes = [1, 128], strides = [1, 1]} : vector<5x128xf32> to vector<1x128xf32>
    %c12 = arith.constant 12 : index
    %c0_55 = arith.constant 0 : index
    %c0_56 = arith.constant 0 : index
    %67 = vector.load %arg2[%c12, %c0_55, %c0_56] : memref<17x128x128xf32, #tpu.memory_space<vmem>>, vector<1x128x128xf32>
    %68 = vector.shape_cast %67 : vector<1x128x128xf32> to vector<128x128xf32>
    %cst_57 = arith.constant dense<0.000000e+00> : vector<1x128xf32>
    %69 = tpu.matmul %66, %68, %cst_57 {dimension_numbers = #tpu.dot_dimension_numbers<[1], [0], [0], [1], [0, 0, 1, 1], [], []>} : vector<1x128xf32>, vector<128x128xf32>, vector<1x128xf32> -> vector<1x128xf32>
    %70 = vector.extract_strided_slice %57 {offsets = [3, 0], sizes = [1, 128], strides = [1, 1]} : vector<5x128xf32> to vector<1x128xf32>
    %c13 = arith.constant 13 : index
    %c0_58 = arith.constant 0 : index
    %c0_59 = arith.constant 0 : index
    %71 = vector.load %arg2[%c13, %c0_58, %c0_59] : memref<17x128x128xf32, #tpu.memory_space<vmem>>, vector<1x128x128xf32>
    %72 = vector.shape_cast %71 : vector<1x128x128xf32> to vector<128x128xf32>
    %cst_60 = arith.constant dense<0.000000e+00> : vector<1x128xf32>
    %73 = tpu.matmul %70, %72, %cst_60 {dimension_numbers = #tpu.dot_dimension_numbers<[1], [0], [0], [1], [0, 0, 1, 1], [], []>} : vector<1x128xf32>, vector<128x128xf32>, vector<1x128xf32> -> vector<1x128xf32>
    %74 = vector.extract_strided_slice %57 {offsets = [4, 0], sizes = [1, 128], strides = [1, 1]} : vector<5x128xf32> to vector<1x128xf32>
    %c14 = arith.constant 14 : index
    %c0_61 = arith.constant 0 : index
    %c0_62 = arith.constant 0 : index
    %75 = vector.load %arg2[%c14, %c0_61, %c0_62] : memref<17x128x128xf32, #tpu.memory_space<vmem>>, vector<1x128x128xf32>
    %76 = vector.shape_cast %75 : vector<1x128x128xf32> to vector<128x128xf32>
    %cst_63 = arith.constant dense<0.000000e+00> : vector<1x128xf32>
    %77 = tpu.matmul %74, %76, %cst_63 {dimension_numbers = #tpu.dot_dimension_numbers<[1], [0], [0], [1], [0, 0, 1, 1], [], []>} : vector<1x128xf32>, vector<128x128xf32>, vector<1x128xf32> -> vector<1x128xf32>
    %78 = arith.addf %61, %65 : vector<1x128xf32>
    %79 = arith.addf %69, %73 : vector<1x128xf32>
    %80 = arith.addf %78, %79 : vector<1x128xf32>
    %81 = arith.addf %80, %77 : vector<1x128xf32>
    %c2_64 = arith.constant 2 : index
    %c0_65 = arith.constant 0 : index
    %82 = vector.load %arg3[%c2_64, %c0_65] : memref<5x128xf32, #tpu.memory_space<vmem>>, vector<1x128xf32>
    %83 = arith.addf %81, %82 : vector<1x128xf32>
    %cst_66 = arith.constant 0.000000e+00 : f32
    %84 = vector.broadcast %cst_66 : f32 to vector<1x128xf32>
    %85 = arith.maximumf %83, %84 : vector<1x128xf32>
    %c15 = arith.constant 15 : index
    %c0_67 = arith.constant 0 : index
    %c0_68 = arith.constant 0 : index
    %86 = vector.load %arg2[%c15, %c0_67, %c0_68] : memref<17x128x128xf32, #tpu.memory_space<vmem>>, vector<1x128x128xf32>
    %87 = vector.shape_cast %86 : vector<1x128x128xf32> to vector<128x128xf32>
    %cst_69 = arith.constant dense<0.000000e+00> : vector<1x128xf32>
    %88 = tpu.matmul %85, %87, %cst_69 {dimension_numbers = #tpu.dot_dimension_numbers<[1], [0], [0], [1], [0, 0, 1, 1], [], []>} : vector<1x128xf32>, vector<128x128xf32>, vector<1x128xf32> -> vector<1x128xf32>
    %c3_70 = arith.constant 3 : index
    %c0_71 = arith.constant 0 : index
    %89 = vector.load %arg3[%c3_70, %c0_71] : memref<5x128xf32, #tpu.memory_space<vmem>>, vector<1x128xf32>
    %90 = arith.addf %88, %89 : vector<1x128xf32>
    %cst_72 = arith.constant 0.000000e+00 : f32
    %91 = vector.broadcast %cst_72 : f32 to vector<1x128xf32>
    %92 = arith.maximumf %90, %91 : vector<1x128xf32>
    %c16 = arith.constant 16 : index
    %c0_73 = arith.constant 0 : index
    %c0_74 = arith.constant 0 : index
    %93 = vector.load %arg2[%c16, %c0_73, %c0_74] : memref<17x128x128xf32, #tpu.memory_space<vmem>>, vector<1x128x128xf32>
    %94 = vector.shape_cast %93 : vector<1x128x128xf32> to vector<128x128xf32>
    %cst_75 = arith.constant dense<0.000000e+00> : vector<1x128xf32>
    %95 = tpu.matmul %92, %94, %cst_75 {dimension_numbers = #tpu.dot_dimension_numbers<[1], [0], [0], [1], [0, 0, 1, 1], [], []>} : vector<1x128xf32>, vector<128x128xf32>, vector<1x128xf32> -> vector<1x128xf32>
    %c4_76 = arith.constant 4 : index
    %c0_77 = arith.constant 0 : index
    %96 = vector.load %arg3[%c4_76, %c0_77] : memref<5x128xf32, #tpu.memory_space<vmem>>, vector<1x128xf32>
    %97 = arith.addf %95, %96 : vector<1x128xf32>
    %c0_78 = arith.constant 0 : index
    %c0_79 = arith.constant 0 : index
    %c0_80 = arith.constant 0 : index
    %98 = vector.load %arg6[%c0_78, %c0_79, %c0_80] : memref<1x1x128xf32, #tpu.memory_space<vmem>>, vector<1x1x128xf32>
    %99 = vector.shape_cast %98 : vector<1x1x128xf32> to vector<1x128xf32>
    %100 = vector.shape_cast %97 : vector<1x128xf32> to vector<1x1x128xf32>
    tpu.vector_store %arg6[%c0_78, %c0_79, %c0_80], %100 {strides = array<i32>} : memref<1x1x128xf32, #tpu.memory_space<vmem>>, vector<1x1x128xf32>,
    return
  }
  func.func @transform_0(%arg0: i32) -> (i32, i32) {
    %c0_i32 = arith.constant 0 : i32
    %c0_i32_0 = arith.constant 0 : i32
    return %arg0, %c0_i32 : i32, i32
  }
  func.func @transform_1(%arg0: i32) -> (i32, i32, i32) {
    %c0_i32 = arith.constant 0 : i32
    %c0_i32_0 = arith.constant 0 : i32
    %c0_i32_1 = arith.constant 0 : i32
    %c0_i32_2 = arith.constant 0 : i32
    return %c0_i32, %c0_i32_0, %c0_i32_1 : i32, i32, i32
  }
  func.func @transform_2(%arg0: i32) -> (i32, i32) {
    %c0_i32 = arith.constant 0 : i32
    %c0_i32_0 = arith.constant 0 : i32
    %c0_i32_1 = arith.constant 0 : i32
    return %c0_i32, %c0_i32_0 : i32, i32
  }
  func.func @transform_3(%arg0: i32) -> (i32, i32) {
    %c0_i32 = arith.constant 0 : i32
    %c0_i32_0 = arith.constant 0 : i32
    %c0_i32_1 = arith.constant 0 : i32
    return %c0_i32, %c0_i32_0 : i32, i32
  }
  func.func @transform_4(%arg0: i32) -> (i32, i32) {
    %c0_i32 = arith.constant 0 : i32
    %c0_i32_0 = arith.constant 0 : i32
    %c0_i32_1 = arith.constant 0 : i32
    return %c0_i32, %c0_i32_0 : i32, i32
  }
  func.func @transform_5(%arg0: i32) -> (i32, i32, i32) {
    %c0_i32 = arith.constant 0 : i32
    %c0_i32_0 = arith.constant 0 : i32
    %c0_i32_1 = arith.constant 0 : i32
    return %arg0, %c0_i32, %c0_i32_0 : i32, i32, i32
  }
}

</mosaic_0001>

<llo_original>
// kernel: lenet_forward_pallas.1
$region0: #{lenet_forward_pallas.1}
  #allocation0 [shape = 'u32[]', space=smem, size = 0x4, offset = 0x4, fixed_abs, tag = 'smem constant byte address 0x4 - core index']
  #allocation1 [shape = 'u32[72,128]{1,0:T(1,128)}', space=vmem, size = 0x9000, scoped, tag = 'internal scratch']
  %s0 = inlined_call_operand.vmem [shape: f32[64,128], index: 0, kind: input, shape index: {}]
  %s1 = inlined_call_operand.hbm [shape: f32[17,128,128], index: 1, kind: input, shape index: {}]
  %s2 = inlined_call_operand.hbm [shape: f32[5,128], index: 2, kind: input, shape index: {}]
  %s3 = inlined_call_operand.hbm [shape: f32[14,28], index: 3, kind: input, shape index: {}]
  %s4 = inlined_call_operand.hbm [shape: f32[5,10], index: 4, kind: input, shape index: {}]
  %s5 = inlined_call_operand.hbm [shape: f32[2,1,128], index: 5, kind: output, shape index: {}]
  %s6 = sld [smem:[#allocation0]]
  $region69: #{lenet_forward_pallas.1} parent=0
    _
  %s8 = ssub.s32 1, %s6
  %s9 = scalar_select 0, %s8, %s6
  $region1: #{lenet_forward_pallas.1} parent=0
    #allocation2 [shape = 'u8[1114112]{0}', space=vmem, size = 0x110000, scoped, tag = 'input window, operand 1, single buffered']
    #allocation3 [shape = 's32[2]{0}', space=sflag, size = 0x8, scoped, tag = 'scoped memory for lenet_forward_pallas.1']
    #allocation4 [shape = 's32[2]{0}', space=sflag, size = 0x8, scoped, tag = 'scoped memory for lenet_forward_pallas.1']
    #allocation5 [shape = 'u8[4096]{0}', space=vmem, size = 0x1000, scoped, tag = 'input window, operand 2, single buffered']
    #allocation6 [shape = 's32[1]{0}', space=sflag, size = 0x4, scoped, tag = 'scoped memory for lenet_forward_pallas.1']
    #allocation7 [shape = 'u8[8192]{0}', space=vmem, size = 0x2000, scoped, tag = 'input window, operand 3, single buffered']
    #allocation8 [shape = 'u8[4096]{0}', space=vmem, size = 0x1000, scoped, tag = 'input window, operand 4, single buffered']
    #allocation9 [shape = 's32[1]{0}', space=sflag, size = 0x4, scoped, tag = 'scoped memory for lenet_forward_pallas.1']
    #allocation10 [shape = 'u8[1024]{0}', space=vmem, size = 0x400, scoped, tag = 'output window, operand 0']
    %10 = vsyncpa [#allocation3], 0
    %11 = vsyncpa [#allocation6], 0
    %12 = vsyncpa [#allocation9], 0
    %13 = vsyncpa [#allocation4], 0
    %s14 = scalar_lea.sflag [#allocation4], 1
    %15 = vsyncpa %s14, 0
    loop: start=0, step=1, limit=4
    $region2: #{lenet_forward_pallas.1} parent=1 // loop_pre_header
      _
    $region3: #{lenet_forward_pallas.1} parent=1 // loop_header
      %s17 = sphi 0, %s21
      %p18 = scmp.ge.s32.totalorder %s17, 4
      %s27 = sphi 0, %s29
      %s30 = sphi 0, %s27
      %s31 = sphi 0, %s30
      %s47 = sphi 0, %s31
      %s51 = sphi 0, %s51
      %s53 = sphi 0, %s51
      %s54 = sphi 0, %s53
      %s68 = sphi 0, %s54
      %s72 = sphi 0, %s72
      %s74 = sphi 0, %s72
      %s75 = sphi 0, %s74
      %s89 = sphi 0, %s75
      %s93 = sphi 0, %s93
      %s95 = sphi 0, %s93
      %s96 = sphi 0, %s95
      %s110 = sphi 0, %s96
      %s114 = sphi 0, %s114
      %s116 = sphi 0, %s114
      %s117 = sphi 0, %s116
      %s131 = sphi 0, %s117
      %s137 = sphi 0, %s139
      %s140 = sphi 0, %s137
      %s141 = sphi 0, %s140
      %s157 = sphi 0, %s141
    $region4: #{lenet_forward_pallas.1} parent=1 // loop_header_branch
      %20 = sbr.rel (%p18) target = $region8
    $region5: #{lenet_forward_pallas.1} parent=1 // loop_body
      %s22 = ssub.s32 %s17, 1
      %s23 = ssub.s32 %s17, 2
      %s24 = sadd.s32 %s17, 1
      %s25 = ssub.s32 %s17, %s24
      %p26 = scmp.eq.s32.totalorder %s25, 0
      %s28 = sadd.s32 %s27, 1
      %s29 = scalar_select %p26, %s27, %s28
      %p32 = pneg %p26
      %p33 = scmp.eq.s32.totalorder %s17, 1
      %p34 = por %p32, %p33
      %p35 = scmp.ne.s32.totalorder %s27, %s30
      %p36 = scmp.eq.s32.totalorder %s17, 0
      %p37 = por %p35, %p36
      %p38 = scmp.ne.s32.totalorder %s27, %s30
      %p39 = scmp.eq.s32.totalorder %s22, 1
      %p40 = por %p38, %p39
      %p41 = scmp.ne.s32.totalorder %s30, %s31
      %p42 = scmp.eq.s32.totalorder %s22, 0
      %p43 = por %p41, %p42
      %p44 = scmp.ne.s32.totalorder %s30, %s31
      %p45 = scmp.eq.s32.totalorder %s23, 1
      %p46 = por %p44, %p45
      %p48 = scmp.ne.s32.totalorder %s31, %s47
      %p49 = scmp.eq.s32.totalorder %s23, 0
      %p50 = por %p48, %p49
      %s52 = sadd.s32 %s51, 1
      %p55 = scmp.eq.s32.totalorder %s17, 1
      %p56 = scmp.ne.s32.totalorder %s51, %s53
      %p57 = scmp.eq.s32.totalorder %s17, 0
      %p58 = por %p56, %p57
      %p59 = scmp.ne.s32.totalorder %s51, %s53
      %p60 = scmp.eq.s32.totalorder %s22, 1
      %p61 = por %p59, %p60
      %p62 = scmp.ne.s32.totalorder %s53, %s54
      %p63 = scmp.eq.s32.totalorder %s22, 0
      %p64 = por %p62, %p63
      %p65 = scmp.ne.s32.totalorder %s53, %s54
      %p66 = scmp.eq.s32.totalorder %s23, 1
      %p67 = por %p65, %p66
      %p69 = scmp.ne.s32.totalorder %s54, %s68
      %p70 = scmp.eq.s32.totalorder %s23, 0
      %p71 = por %p69, %p70
      %s73 = sadd.s32 %s72, 1
      %p76 = scmp.eq.s32.totalorder %s17, 1
      %p77 = scmp.ne.s32.totalorder %s72, %s74
      %p78 = scmp.eq.s32.totalorder %s17, 0
      %p79 = por %p77, %p78
      %p80 = scmp.ne.s32.totalorder %s72, %s74
      %p81 = scmp.eq.s32.totalorder %s22, 1
      %p82 = por %p80, %p81
      %p83 = scmp.ne.s32.totalorder %s74, %s75
      %p84 = scmp.eq.s32.totalorder %s22, 0
      %p85 = por %p83, %p84
      %p86 = scmp.ne.s32.totalorder %s74, %s75
      %p87 = scmp.eq.s32.totalorder %s23, 1
      %p88 = por %p86, %p87
      %p90 = scmp.ne.s32.totalorder %s75, %s89
      %p91 = scmp.eq.s32.totalorder %s23, 0
      %p92 = por %p90, %p91
      %s94 = sadd.s32 %s93, 1
      %p97 = scmp.eq.s32.totalorder %s17, 1
      %p98 = scmp.ne.s32.totalorder %s93, %s95
      %p99 = scmp.eq.s32.totalorder %s17, 0
      %p100 = por %p98, %p99
      %p101 = scmp.ne.s32.totalorder %s93, %s95
      %p102 = scmp.eq.s32.totalorder %s22, 1
      %p103 = por %p101, %p102
      %p104 = scmp.ne.s32.totalorder %s95, %s96
      %p105 = scmp.eq.s32.totalorder %s22, 0
      %p106 = por %p104, %p105
      %p107 = scmp.ne.s32.totalorder %s95, %s96
      %p108 = scmp.eq.s32.totalorder %s23, 1
      %p109 = por %p107, %p108
      %p111 = scmp.ne.s32.totalorder %s96, %s110
      %p112 = scmp.eq.s32.totalorder %s23, 0
      %p113 = por %p111, %p112
      %s115 = sadd.s32 %s114, 1
      %p118 = scmp.eq.s32.totalorder %s17, 1
      %p119 = scmp.ne.s32.totalorder %s114, %s116
      %p120 = scmp.eq.s32.totalorder %s17, 0
      %p121 = por %p119, %p120
      %p122 = scmp.ne.s32.totalorder %s114, %s116
      %p123 = scmp.eq.s32.totalorder %s22, 1
      %p124 = por %p122, %p123
      %p125 = scmp.ne.s32.totalorder %s116, %s117
      %p126 = scmp.eq.s32.totalorder %s22, 0
      %p127 = por %p125, %p126
      %p128 = scmp.ne.s32.totalorder %s116, %s117
      %p129 = scmp.eq.s32.totalorder %s23, 1
      %p130 = por %p128, %p129
      %p132 = scmp.ne.s32.totalorder %s117, %s131
      %p133 = scmp.eq.s32.totalorder %s23, 0
      %p134 = por %p132, %p133
      %s135 = ssub.s32 %s17, %s24
      %p136 = scmp.eq.s32.totalorder %s135, 0
      %s138 = sadd.s32 %s137, 1
      %s139 = scalar_select %p136, %s137, %s138
      %p142 = pneg %p136
      %p143 = scmp.eq.s32.totalorder %s17, 1
      %p144 = por %p142, %p143
      %p145 = scmp.ne.s32.totalorder %s137, %s140
      %p146 = scmp.eq.s32.totalorder %s17, 0
      %p147 = por %p145, %p146
      %p148 = scmp.ne.s32.totalorder %s137, %s140
      %p149 = scmp.eq.s32.totalorder %s22, 1
      %p150 = por %p148, %p149
      %p151 = scmp.ne.s32.totalorder %s140, %s141
      %p152 = scmp.eq.s32.totalorder %s22, 0
      %p153 = por %p151, %p152
      %p154 = scmp.ne.s32.totalorder %s140, %s141
      %p155 = scmp.eq.s32.totalorder %s23, 1
      %p156 = por %p154, %p155
      %p158 = scmp.ne.s32.totalorder %s141, %s157
      %p159 = scmp.eq.s32.totalorder %s23, 0
      %p160 = por %p158, %p159
      %p161 = scmp.le.s32.totalorder 1, %s17
      %p162 = scmp.lt.s32.totalorder %s17, 3
      %p163 = pnand %p161, %p162
      %p164 = pneg %p163
      // Predicated region
      $region9: #{lenet_forward_pallas.1} parent=5 // pred_check
        _
      $region10: #{lenet_forward_pallas.1} parent=5 // pred_check_branch
        %166 = sbr.rel (%p163) target = $region12
      $region11: #{lenet_forward_pallas.1} parent=5 // pred_region
        %s167 = ssub.s32 %s17, 1
        // Predicated region
        $region13: #{lenet_forward_pallas.1} parent=11 // pred_check
          %p168 = pneg %p64
        $region14: #{lenet_forward_pallas.1} parent=11 // pred_check_branch
          %170 = sbr.rel (%p168) target = $region16
        $region15: #{lenet_forward_pallas.1} parent=11 // pred_region
          %172 = vsyncadd [#allocation3], 0
          %s173 = sshll.u32 %s1, 4
          %s174 = int_to_ptr.hbm [resolvable:$true] %s173
          %s175 = sshll.u32 [#allocation2], 4
          %s176 = int_to_ptr.vmem [resolvable:$true] %s175
          %181 = dma.hbm_to_vmem [thread:$0]  %s174, 34816, %s176, [#allocation3], 128, 128, 8
        $region16: #{lenet_forward_pallas.1} parent=11 // pred_fallthru
          _
        // Predicated region
        $region17: #{lenet_forward_pallas.1} parent=11 // pred_check
          %p182 = pneg %p85
        $region18: #{lenet_forward_pallas.1} parent=11 // pred_check_branch
          %184 = sbr.rel (%p182) target = $region20
        $region19: #{lenet_forward_pallas.1} parent=11 // pred_region
          %186 = vsyncadd [#allocation6], 0
          %s188 = sshll.u32 %s2, 4
          %s189 = int_to_ptr.hbm [resolvable:$true] %s188
          %s190 = sshll.u32 [#allocation5], 4
          %s191 = int_to_ptr.vmem [resolvable:$true] %s190
          %193 = dma.hbm_to_vmem [thread:$0]  %s189, 128, %s191, [#allocation6]
        $region20: #{lenet_forward_pallas.1} parent=11 // pred_fallthru
          _
        // Predicated region
        $region21: #{lenet_forward_pallas.1} parent=11 // pred_check
          %p194 = pneg %p106
        $region22: #{lenet_forward_pallas.1} parent=11 // pred_check_branch
          %196 = sbr.rel (%p194) target = $region24
        $region23: #{lenet_forward_pallas.1} parent=11 // pred_region
          %198 = vsyncadd [#allocation6], 0
          %s199 = sshll.u32 %s3, 4
          %s200 = int_to_ptr.hbm [resolvable:$true] %s199
          %s201 = sshll.u32 [#allocation7], 4
          %s202 = int_to_ptr.vmem [resolvable:$true] %s201
          %207 = dma.hbm_to_vmem [thread:$0]  %s200, 256, %s202, [#allocation6], 128, 128, 8
        $region24: #{lenet_forward_pallas.1} parent=11 // pred_fallthru
          _
        // Predicated region
        $region25: #{lenet_forward_pallas.1} parent=11 // pred_check
          %p208 = pneg %p127
        $region26: #{lenet_forward_pallas.1} parent=11 // pred_check_branch
          %210 = sbr.rel (%p208) target = $region28
        $region27: #{lenet_forward_pallas.1} parent=11 // pred_region
          %212 = vsyncadd [#allocation9], 0
          %s214 = sshll.u32 %s4, 4
          %s215 = int_to_ptr.hbm [resolvable:$true] %s214
          %s216 = sshll.u32 [#allocation8], 4
          %s217 = int_to_ptr.vmem [resolvable:$true] %s216
          %219 = dma.hbm_to_vmem [thread:$0]  %s215, 128, %s217, [#allocation9]
        $region28: #{lenet_forward_pallas.1} parent=11 // pred_fallthru
          _
      $region12: #{lenet_forward_pallas.1} parent=5 // pred_fallthru
        _
      %p220 = scmp.lt.s32.totalorder %s17, 2
      // Predicated region
      $region29: #{lenet_forward_pallas.1} parent=5 // pred_check
        %p221 = pneg %p220
      $region30: #{lenet_forward_pallas.1} parent=5 // pred_check_branch
        %223 = sbr.rel (%p221) target = $region32
      $region31: #{lenet_forward_pallas.1} parent=5 // pred_region
        // Predicated region
        $region33: #{lenet_forward_pallas.1} parent=31 // pred_check
          %p224 = pneg %p37
        $region34: #{lenet_forward_pallas.1} parent=31 // pred_check_branch
          %226 = sbr.rel (%p224) target = $region36
        $region35: #{lenet_forward_pallas.1} parent=31 // pred_region
          %s227 = smul.u32 4, %s17
          %p228 = scmp.lt.s32.totalorder %s227, 7
          %s229 = scalar_select %p228, %s227, 7
          %s230 = smul.addr %s229, 8
          %s231 = scalar_lea.vmem %s0, %s230
          %s232 = smul.u32 4, %s17
        $region36: #{lenet_forward_pallas.1} parent=31 // pred_fallthru
          _
      $region32: #{lenet_forward_pallas.1} parent=5 // pred_fallthru
        _
      %p233 = scmp.le.s32.totalorder 1, %s17
      %p234 = scmp.lt.s32.totalorder %s17, 3
      %p235 = pnand %p233, %p234
      %p236 = pneg %p235
      // Predicated region
      $region37: #{lenet_forward_pallas.1} parent=5 // pred_check
        _
      $region38: #{lenet_forward_pallas.1} parent=5 // pred_check_branch
        %238 = sbr.rel (%p235) target = $region40
      $region39: #{lenet_forward_pallas.1} parent=5 // pred_region
        %s239 = ssub.s32 %s17, 1
        // Predicated region
        $region41: #{lenet_forward_pallas.1} parent=39 // pred_check
          %p240 = pneg %p64
        $region42: #{lenet_forward_pallas.1} parent=39 // pred_check_branch
          %242 = sbr.rel (%p240) target = $region44
        $region43: #{lenet_forward_pallas.1} parent=39 // pred_region
          %244 = dma.done [#allocation3], 34816
        $region44: #{lenet_forward_pallas.1} parent=39 // pred_fallthru
          _
        // Predicated region
        $region45: #{lenet_forward_pallas.1} parent=39 // pred_check
          %p245 = pneg %p85
        $region46: #{lenet_forward_pallas.1} parent=39 // pred_check_branch
          %247 = sbr.rel (%p245) target = $region48
        $region47: #{lenet_forward_pallas.1} parent=39 // pred_region
          %249 = dma.done [#allocation6], 128
        $region48: #{lenet_forward_pallas.1} parent=39 // pred_fallthru
          _
        // Predicated region
        $region49: #{lenet_forward_pallas.1} parent=39 // pred_check
          %p250 = pneg %p106
        $region50: #{lenet_forward_pallas.1} parent=39 // pred_check_branch
          %252 = sbr.rel (%p250) target = $region52
        $region51: #{lenet_forward_pallas.1} parent=39 // pred_region
          %254 = dma.done [#allocation6], 256
        $region52: #{lenet_forward_pallas.1} parent=39 // pred_fallthru
          _
        // Predicated region
        $region53: #{lenet_forward_pallas.1} parent=39 // pred_check
          %p255 = pneg %p127
        $region54: #{lenet_forward_pallas.1} parent=39 // pred_check_branch
          %257 = sbr.rel (%p255) target = $region56
        $region55: #{lenet_forward_pallas.1} parent=39 // pred_region
          %259 = dma.done [#allocation9], 128
        $region56: #{lenet_forward_pallas.1} parent=39 // pred_fallthru
          _
        %s260 = smul.u32 4, %s22
        %p261 = scmp.lt.s32.totalorder %s260, 7
        %s262 = scalar_select %p261, %s260, 7
        %s263 = smul.addr %s262, 8
        %s264 = scalar_lea.vmem %s0, %s263
        %p265 = pneg %p43
        %p266 = pneg %p40
        %p267 = pneg %p64
        %p268 = pneg %p61
        %p269 = pneg %p85
        %p270 = pneg %p82
        %p271 = pneg %p106
        %p272 = pneg %p103
        %p273 = pneg %p127
        %p274 = pneg %p124
        %p275 = pneg %p153
        %p276 = pneg %p150
        %s277 = sand.u32 %s140, 1
        %s278 = scalar_lea.sflag [#allocation4], %s277
        %s279 = sand.u32 %s140, 1
        %s280 = scalar_lea.vmem [#allocation10], %s279
        %s281 = smul.u32 4, %s22
        %p282 = scmp.lt.s32.totalorder %s281, 7
        %s283 = scalar_select %p282, %s281, 7
        %s284 = smul.addr %s283, 8
        %s285 = scalar_lea.vmem %s0, %s284
        %s286 = smul.u32 4, %s22
        %v287 = vld [vmem:[%s285] sm:$0xff]
        %v288 = vld [vmem:[%s285 + $0x8] sm:$0xff]
        %v289 = vld [vmem:[%s285 + $0x10] sm:$0xff]
        %v290 = vld [vmem:[%s285 + $0x18] sm:$0xf]
        %v291 = vld [vmem:[#allocation2] sm:$0xff]
        %v292 = vld [vmem:[#allocation2 + $0x8] sm:$0xff]
        %v293 = vld [vmem:[#allocation2 + $0x10] sm:$0xff]
        %v294 = vld [vmem:[#allocation2 + $0x18] sm:$0xff]
        %v295 = vld [vmem:[#allocation2 + $0x20] sm:$0xff]
        %v296 = vld [vmem:[#allocation2 + $0x28] sm:$0xff]
        %v297 = vld [vmem:[#allocation2 + $0x30] sm:$0xff]
        %v298 = vld [vmem:[#allocation2 + $0x38] sm:$0xff]
        %v299 = vld [vmem:[#allocation2 + $0x40] sm:$0xff]
        %v300 = vld [vmem:[#allocation2 + $0x48] sm:$0xff]
        %v301 = vld [vmem:[#allocation2 + $0x50] sm:$0xff]
        %v302 = vld [vmem:[#allocation2 + $0x58] sm:$0xff]
        %v303 = vld [vmem:[#allocation2 + $0x60] sm:$0xff]
        %v304 = vld [vmem:[#allocation2 + $0x68] sm:$0xff]
        %v305 = vld [vmem:[#allocation2 + $0x70] sm:$0xff]
        %v306 = vld [vmem:[#allocation2 + $0x78] sm:$0xff]
        %v307 = vld [vmem:[%s285 + $0x1] sm:$0xff]
        %v308 = vld [vmem:[%s285 + $0x9] sm:$0xff]
        %v309 = vld [vmem:[%s285 + $0x11] sm:$0xff]
        %v310 = vld [vmem:[%s285 + $0x19] sm:$0xf]
        %s311 = scalar_lea.vmem [#allocation2], 128
        %v312 = vld [vmem:[%s311] sm:$0xff]
        %v313 = vld [vmem:[%s311 + $0x8] sm:$0xff]
        %v314 = vld [vmem:[%s311 + $0x10] sm:$0xff]
        %v315 = vld [vmem:[%s311 + $0x18] sm:$0xff]
        %v316 = vld [vmem:[%s311 + $0x20] sm:$0xff]
        %v317 = vld [vmem:[%s311 + $0x28] sm:$0xff]
        %v318 = vld [vmem:[%s311 + $0x30] sm:$0xff]
        %v319 = vld [vmem:[%s311 + $0x38] sm:$0xff]
        %v320 = vld [vmem:[%s311 + $0x40] sm:$0xff]
        %v321 = vld [vmem:[%s311 + $0x48] sm:$0xff]
        %v322 = vld [vmem:[%s311 + $0x50] sm:$0xff]
        %v323 = vld [vmem:[%s311 + $0x58] sm:$0xff]
        %v324 = vld [vmem:[%s311 + $0x60] sm:$0xff]
        %v325 = vld [vmem:[%s311 + $0x68] sm:$0xff]
        %v326 = vld [vmem:[%s311 + $0x70] sm:$0xff]
        %v327 = vld [vmem:[%s311 + $0x78] sm:$0xff]
        %328 = vmatpush.msra.mxu0 %v327
        %329 = vmatpush.msra.mxu0 %v326
        %330 = vmatpush.msra.mxu0 %v325
        %331 = vmatpush.msra.mxu0 %v324
        %332 = vmatpush.msra.mxu0 %v323
        %333 = vmatpush.msra.mxu0 %v322
        %334 = vmatpush.msra.mxu0 %v321
        %335 = vmatpush.msra.mxu0 %v320
        %336 = vmatpush.msra.mxu0 %v319
        %337 = vmatpush.msra.mxu0 %v318
        %338 = vmatpush.msra.mxu0 %v317
        %339 = vmatpush.msra.mxu0 %v316
        %340 = vmatpush.msra.mxu0 %v315
        %341 = vmatpush.msra.mxu0 %v314
        %342 = vmatpush.msra.mxu0 %v313
        %343 = vmatpush.msra.mxu0 %v312
        %344 = vmatmul.f32.gmra.mxu0 %v307
        %v345 = vpop.f32.mrf.mxu0
        %v346 = vadd.f32 0.0, %v345
        %347 = vmatmul.f32.gmra.mxu0 %v308
        %v348 = vpop.f32.mrf.mxu0
        %v349 = vadd.f32 0.0, %v348
        %350 = vmatmul.f32.gmra.mxu0 %v309
        %v351 = vpop.f32.mrf.mxu0
        %v352 = vadd.f32 0.0, %v351
        %353 = vmatmul.f32.gmra.mxu0 %v310
        %v354 = vpop.f32.mrf.mxu0
        %v355 = vadd.f32 0.0, %v354
        %356 = vdwg.mxu0
        %v357 = vld [vmem:[%s285 + $0x2] sm:$0xff]
        %v358 = vld [vmem:[%s285 + $0xa] sm:$0xff]
        %v359 = vld [vmem:[%s285 + $0x12] sm:$0xff]
        %v360 = vld [vmem:[%s285 + $0x1a] sm:$0xf]
        %s361 = scalar_lea.vmem [#allocation2], 256
        %v362 = vld [vmem:[%s361] sm:$0xff]
        %v363 = vld [vmem:[%s361 + $0x8] sm:$0xff]
        %v364 = vld [vmem:[%s361 + $0x10] sm:$0xff]
        %v365 = vld [vmem:[%s361 + $0x18] sm:$0xff]
        %v366 = vld [vmem:[%s361 + $0x20] sm:$0xff]
        %v367 = vld [vmem:[%s361 + $0x28] sm:$0xff]
        %v368 = vld [vmem:[%s361 + $0x30] sm:$0xff]
        %v369 = vld [vmem:[%s361 + $0x38] sm:$0xff]
        %v370 = vld [vmem:[%s361 + $0x40] sm:$0xff]
        %v371 = vld [vmem:[%s361 + $0x48] sm:$0xff]
        %v372 = vld [vmem:[%s361 + $0x50] sm:$0xff]
        %v373 = vld [vmem:[%s361 + $0x58] sm:$0xff]
        %v374 = vld [vmem:[%s361 + $0x60] sm:$0xff]
        %v375 = vld [vmem:[%s361 + $0x68] sm:$0xff]
        %v376 = vld [vmem:[%s361 + $0x70] sm:$0xff]
        %v377 = vld [vmem:[%s361 + $0x78] sm:$0xff]
        %v378 = vld [vmem:[%s285 + $0x3] sm:$0xff]
        %v379 = vld [vmem:[%s285 + $0xb] sm:$0xff]
        %v380 = vld [vmem:[%s285 + $0x13] sm:$0xff]
        %v381 = vld [vmem:[%s285 + $0x1b] sm:$0xf]
        %s382 = scalar_lea.vmem [#allocation2], 384
        %v383 = vld [vmem:[%s382] sm:$0xff]
        %v384 = vld [vmem:[%s382 + $0x8] sm:$0xff]
        %v385 = vld [vmem:[%s382 + $0x10] sm:$0xff]
        %v386 = vld [vmem:[%s382 + $0x18] sm:$0xff]
        %v387 = vld [vmem:[%s382 + $0x20] sm:$0xff]
        %v388 = vld [vmem:[%s382 + $0x28] sm:$0xff]
        %v389 = vld [vmem:[%s382 + $0x30] sm:$0xff]
        %v390 = vld [vmem:[%s382 + $0x38] sm:$0xff]
        %v391 = vld [vmem:[%s382 + $0x40] sm:$0xff]
        %v392 = vld [vmem:[%s382 + $0x48] sm:$0xff]
        %v393 = vld [vmem:[%s382 + $0x50] sm:$0xff]
        %v394 = vld [vmem:[%s382 + $0x58] sm:$0xff]
        %v395 = vld [vmem:[%s382 + $0x60] sm:$0xff]
        %v396 = vld [vmem:[%s382 + $0x68] sm:$0xff]
        %v397 = vld [vmem:[%s382 + $0x70] sm:$0xff]
        %v398 = vld [vmem:[%s382 + $0x78] sm:$0xff]
        %399 = vmatpush.msra.mxu0 %v398
        %400 = vmatpush.msra.mxu0 %v397
        %401 = vmatpush.msra.mxu0 %v396
        %402 = vmatpush.msra.mxu0 %v395
        %403 = vmatpush.msra.mxu0 %v394
        %404 = vmatpush.msra.mxu0 %v393
        %405 = vmatpush.msra.mxu0 %v392
        %406 = vmatpush.msra.mxu0 %v391
        %407 = vmatpush.msra.mxu0 %v390
        %408 = vmatpush.msra.mxu0 %v389
        %409 = vmatpush.msra.mxu0 %v388
        %410 = vmatpush.msra.mxu0 %v387
        %411 = vmatpush.msra.mxu0 %v386
        %412 = vmatpush.msra.mxu0 %v385
        %413 = vmatpush.msra.mxu0 %v384
        %414 = vmatpush.msra.mxu0 %v383
        %415 = vmatmul.f32.gmra.mxu0 %v378
        %v416 = vpop.f32.mrf.mxu0
        %v417 = vadd.f32 0.0, %v416
        %418 = vmatmul.f32.gmra.mxu0 %v379
        %v419 = vpop.f32.mrf.mxu0
        %v420 = vadd.f32 0.0, %v419
        %421 = vmatmul.f32.gmra.mxu0 %v380
        %v422 = vpop.f32.mrf.mxu0
        %v423 = vadd.f32 0.0, %v422
        %424 = vmatmul.f32.gmra.mxu0 %v381
        %v425 = vpop.f32.mrf.mxu0
        %v426 = vadd.f32 0.0, %v425
        %427 = vdwg.mxu0
        %v428 = vld [vmem:[%s285 + $0x4] sm:$0xff]
        %v429 = vld [vmem:[%s285 + $0xc] sm:$0xff]
        %v430 = vld [vmem:[%s285 + $0x14] sm:$0xff]
        %v431 = vld [vmem:[%s285 + $0x1c] sm:$0xf]
        %s432 = scalar_lea.vmem [#allocation2], 512
        %v433 = vld [vmem:[%s432] sm:$0xff]
        %v434 = vld [vmem:[%s432 + $0x8] sm:$0xff]
        %v435 = vld [vmem:[%s432 + $0x10] sm:$0xff]
        %v436 = vld [vmem:[%s432 + $0x18] sm:$0xff]
        %v437 = vld [vmem:[%s432 + $0x20] sm:$0xff]
        %v438 = vld [vmem:[%s432 + $0x28] sm:$0xff]
        %v439 = vld [vmem:[%s432 + $0x30] sm:$0xff]
        %v440 = vld [vmem:[%s432 + $0x38] sm:$0xff]
        %v441 = vld [vmem:[%s432 + $0x40] sm:$0xff]
        %v442 = vld [vmem:[%s432 + $0x48] sm:$0xff]
        %v443 = vld [vmem:[%s432 + $0x50] sm:$0xff]
        %v444 = vld [vmem:[%s432 + $0x58] sm:$0xff]
        %v445 = vld [vmem:[%s432 + $0x60] sm:$0xff]
        %v446 = vld [vmem:[%s432 + $0x68] sm:$0xff]
        %v447 = vld [vmem:[%s432 + $0x70] sm:$0xff]
        %v448 = vld [vmem:[%s432 + $0x78] sm:$0xff]
        %449 = vmatpush.msra.mxu0 %v448
        %450 = vmatpush.msra.mxu0 %v447
        %451 = vmatpush.msra.mxu0 %v446
        %452 = vmatpush.msra.mxu0 %v445
        %453 = vmatpush.msra.mxu0 %v444
        %454 = vmatpush.msra.mxu0 %v443
        %455 = vmatpush.msra.mxu0 %v442
        %456 = vmatpush.msra.mxu0 %v441
        %457 = vmatpush.msra.mxu0 %v440
        %458 = vmatpush.msra.mxu0 %v439
        %459 = vmatpush.msra.mxu0 %v438
        %460 = vmatpush.msra.mxu0 %v437
        %461 = vmatpush.msra.mxu0 %v436
        %462 = vmatpush.msra.mxu0 %v435
        %463 = vmatpush.msra.mxu0 %v434
        %464 = vmatpush.msra.mxu0 %v433
        %465 = vmatmul.f32.gmra.mxu0 %v428
        %v466 = vpop.f32.mrf.mxu0
        %v467 = vadd.f32 0.0, %v466
        %468 = vmatmul.f32.gmra.mxu0 %v429
        %v469 = vpop.f32.mrf.mxu0
        %v470 = vadd.f32 0.0, %v469
        %471 = vmatmul.f32.gmra.mxu0 %v430
        %v472 = vpop.f32.mrf.mxu0
        %v473 = vadd.f32 0.0, %v472
        %474 = vmatmul.f32.gmra.mxu0 %v431
        %v475 = vpop.f32.mrf.mxu0
        %v476 = vadd.f32 0.0, %v475
        %477 = vdwg.mxu0
        %478 = vmatpush.msra.mxu0 %v306
        %479 = vmatpush.msra.mxu0 %v305
        %480 = vmatpush.msra.mxu0 %v304
        %481 = vmatpush.msra.mxu0 %v303
        %482 = vmatpush.msra.mxu0 %v302
        %483 = vmatpush.msra.mxu0 %v301
        %484 = vmatpush.msra.mxu0 %v300
        %485 = vmatpush.msra.mxu0 %v299
        %486 = vmatpush.msra.mxu0 %v298
        %487 = vmatpush.msra.mxu0 %v297
        %488 = vmatpush.msra.mxu0 %v296
        %489 = vmatpush.msra.mxu0 %v295
        %490 = vmatpush.msra.mxu0 %v294
        %491 = vmatpush.msra.mxu0 %v293
        %492 = vmatpush.msra.mxu0 %v292
        %493 = vmatpush.msra.mxu0 %v291
        %494 = vmatmul.f32.gmra.mxu0 %v287
        %v495 = vpop.f32.mrf.mxu0
        %v496 = vadd.f32 %v346, %v495
        %497 = vmatmul.f32.gmra.mxu0 %v288
        %v498 = vpop.f32.mrf.mxu0
        %v499 = vadd.f32 %v349, %v498
        %500 = vmatmul.f32.gmra.mxu0 %v289
        %v501 = vpop.f32.mrf.mxu0
        %v502 = vadd.f32 %v352, %v501
        %503 = vmatmul.f32.gmra.mxu0 %v290
        %v504 = vpop.f32.mrf.mxu0
        %v505 = vadd.f32 %v355, %v504
        %506 = vdwg.mxu0
        %507 = vmatpush.msra.mxu0 %v377
        %508 = vmatpush.msra.mxu0 %v376
        %509 = vmatpush.msra.mxu0 %v375
        %510 = vmatpush.msra.mxu0 %v374
        %511 = vmatpush.msra.mxu0 %v373
        %512 = vmatpush.msra.mxu0 %v372
        %513 = vmatpush.msra.mxu0 %v371
        %514 = vmatpush.msra.mxu0 %v370
        %515 = vmatpush.msra.mxu0 %v369
        %516 = vmatpush.msra.mxu0 %v368
        %517 = vmatpush.msra.mxu0 %v367
        %518 = vmatpush.msra.mxu0 %v366
        %519 = vmatpush.msra.mxu0 %v365
        %520 = vmatpush.msra.mxu0 %v364
        %521 = vmatpush.msra.mxu0 %v363
        %522 = vmatpush.msra.mxu0 %v362
        %523 = vmatmul.f32.gmra.mxu0 %v357
        %v524 = vpop.f32.mrf.mxu0
        %v525 = vadd.f32 %v417, %v524
        %526 = vmatmul.f32.gmra.mxu0 %v358
        %v527 = vpop.f32.mrf.mxu0
        %v528 = vadd.f32 %v420, %v527
        %529 = vmatmul.f32.gmra.mxu0 %v359
        %v530 = vpop.f32.mrf.mxu0
        %v531 = vadd.f32 %v423, %v530
        %532 = vmatmul.f32.gmra.mxu0 %v360
        %v533 = vpop.f32.mrf.mxu0
        %v534 = vadd.f32 %v426, %v533
        %535 = vdwg.mxu0
        %v536 = vadd.f32 %v496, %v525
        %v537 = vadd.f32 %v499, %v528
        %v538 = vadd.f32 %v502, %v531
        %v539 = vadd.f32 %v505, %v534
        %v540 = vadd.f32 %v536, %v467
        %v541 = vadd.f32 %v537, %v470
        %v542 = vadd.f32 %v538, %v473
        %v543 = vadd.f32 %v539, %v476
        %v544 = vld [vmem:[#allocation7] sm:$0xff]
        %v545 = vld [vmem:[#allocation7 + $0x8] sm:$0x3f]
        %v546 = vld [vmem:[#allocation5] sm:$0x1]
        %v547 = vperm.slane %v546, 0
        %vm548 = vcmask 228352
        %v550 = vsel %vm548, %v544, 0
        %v553 = vsel %vm548, %v545, 0
        %vm555 = vcmask 1043456
        %v557 = vsel %vm555, %v543, 0
        %559 = vmatpush.msra.mxu0 0.0
        %560 = vmatpush.msra.mxu0 0.0
        %561 = vmatpush.msra.mxu0 0.0
        %562 = vmatpush.msra.mxu0 0.0
        %563 = vmatpush.msra.mxu0 0.0
        %564 = vmatpush.msra.mxu0 0.0
        %565 = vmatpush.msra.mxu0 0.0
        %566 = vmatpush.msra.mxu0 0.0
        %567 = vmatpush.msra.mxu0 0.0
        %568 = vmatpush.msra.mxu0 0.0
        %569 = vmatpush.msra.mxu0 0.0
        %570 = vmatpush.msra.mxu0 0.0
        %571 = vmatpush.msra.mxu0 %v557
        %572 = vmatpush.msra.mxu0 %v542
        %573 = vmatpush.msra.mxu0 %v541
        %574 = vmatpush.msra.mxu0 %v540
        %575 = vmatmul.f32.gmra.mxu0 %v550
        %v576 = vpop.f32.mrf.mxu0
        %v577 = vadd.f32 %v547, %v576
        %578 = vmatmul.f32.gmra.mxu0 %v553
        %v579 = vpop.f32.mrf.mxu0
        %v580 = vadd.f32 %v547, %v579
        %581 = vdwg.mxu0
        %s582 = scalar_lea.vmem [#allocation2], 640
        %v583 = vld [vmem:[%s582] sm:$0xff]
        %v584 = vld [vmem:[%s582 + $0x8] sm:$0xff]
        %v585 = vld [vmem:[%s582 + $0x10] sm:$0xff]
        %v586 = vld [vmem:[%s582 + $0x18] sm:$0xff]
        %v587 = vld [vmem:[%s582 + $0x20] sm:$0xff]
        %v588 = vld [vmem:[%s582 + $0x28] sm:$0xff]
        %v589 = vld [vmem:[%s582 + $0x30] sm:$0xff]
        %v590 = vld [vmem:[%s582 + $0x38] sm:$0xff]
        %v591 = vld [vmem:[%s582 + $0x40] sm:$0xff]
        %v592 = vld [vmem:[%s582 + $0x48] sm:$0xff]
        %v593 = vld [vmem:[%s582 + $0x50] sm:$0xff]
        %v594 = vld [vmem:[%s582 + $0x58] sm:$0xff]
        %v595 = vld [vmem:[%s582 + $0x60] sm:$0xff]
        %v596 = vld [vmem:[%s582 + $0x68] sm:$0xff]
        %v597 = vld [vmem:[%s582 + $0x70] sm:$0xff]
        %v598 = vld [vmem:[%s582 + $0x78] sm:$0xff]
        %s599 = scalar_lea.vmem [#allocation2], 768
        %v600 = vld [vmem:[%s599] sm:$0xff]
        %v601 = vld [vmem:[%s599 + $0x8] sm:$0xff]
        %v602 = vld [vmem:[%s599 + $0x10] sm:$0xff]
        %v603 = vld [vmem:[%s599 + $0x18] sm:$0xff]
        %v604 = vld [vmem:[%s599 + $0x20] sm:$0xff]
        %v605 = vld [vmem:[%s599 + $0x28] sm:$0xff]
        %v606 = vld [vmem:[%s599 + $0x30] sm:$0xff]
        %v607 = vld [vmem:[%s599 + $0x38] sm:$0xff]
        %v608 = vld [vmem:[%s599 + $0x40] sm:$0xff]
        %v609 = vld [vmem:[%s599 + $0x48] sm:$0xff]
        %v610 = vld [vmem:[%s599 + $0x50] sm:$0xff]
        %v611 = vld [vmem:[%s599 + $0x58] sm:$0xff]
        %v612 = vld [vmem:[%s599 + $0x60] sm:$0xff]
        %v613 = vld [vmem:[%s599 + $0x68] sm:$0xff]
        %v614 = vld [vmem:[%s599 + $0x70] sm:$0xff]
        %v615 = vld [vmem:[%s599 + $0x78] sm:$0xff]
        %vm618 = vcmask 1046528
        %v619 = vrot.slane %v577, 1
        %v620 = vrot.slane %v580, 1
        %v621 = vsel %vm618, %v619, %v620
        %624 = vmatpush.msra.mxu0 %v615
        %625 = vmatpush.msra.mxu0 %v614
        %626 = vmatpush.msra.mxu0 %v613
        %627 = vmatpush.msra.mxu0 %v612
        %628 = vmatpush.msra.mxu0 %v611
        %629 = vmatpush.msra.mxu0 %v610
        %630 = vmatpush.msra.mxu0 %v609
        %631 = vmatpush.msra.mxu0 %v608
        %632 = vmatpush.msra.mxu0 %v607
        %633 = vmatpush.msra.mxu0 %v606
        %634 = vmatpush.msra.mxu0 %v605
        %635 = vmatpush.msra.mxu0 %v604
        %636 = vmatpush.msra.mxu0 %v603
        %637 = vmatpush.msra.mxu0 %v602
        %638 = vmatpush.msra.mxu0 %v601
        %639 = vmatpush.msra.mxu0 %v600
        %640 = vmatmul.f32.gmra.mxu0 %v621
        %v641 = vpop.f32.mrf.mxu0
        %v642 = vadd.f32 0.0, %v641
        %643 = vmatmul.f32.gmra.mxu0 %v620
        %v644 = vpop.f32.mrf.mxu0
        %v645 = vadd.f32 0.0, %v644
        %646 = vdwg.mxu0
        %s647 = scalar_lea.vmem [#allocation2], 896
        %v648 = vld [vmem:[%s647] sm:$0xff]
        %v649 = vld [vmem:[%s647 + $0x8] sm:$0xff]
        %v650 = vld [vmem:[%s647 + $0x10] sm:$0xff]
        %v651 = vld [vmem:[%s647 + $0x18] sm:$0xff]
        %v652 = vld [vmem:[%s647 + $0x20] sm:$0xff]
        %v653 = vld [vmem:[%s647 + $0x28] sm:$0xff]
        %v654 = vld [vmem:[%s647 + $0x30] sm:$0xff]
        %v655 = vld [vmem:[%s647 + $0x38] sm:$0xff]
        %v656 = vld [vmem:[%s647 + $0x40] sm:$0xff]
        %v657 = vld [vmem:[%s647 + $0x48] sm:$0xff]
        %v658 = vld [vmem:[%s647 + $0x50] sm:$0xff]
        %v659 = vld [vmem:[%s647 + $0x58] sm:$0xff]
        %v660 = vld [vmem:[%s647 + $0x60] sm:$0xff]
        %v661 = vld [vmem:[%s647 + $0x68] sm:$0xff]
        %v662 = vld [vmem:[%s647 + $0x70] sm:$0xff]
        %v663 = vld [vmem:[%s647 + $0x78] sm:$0xff]
        %s664 = scalar_lea.vmem [#allocation2], 1024
        %v665 = vld [vmem:[%s664] sm:$0xff]
        %v666 = vld [vmem:[%s664 + $0x8] sm:$0xff]
        %v667 = vld [vmem:[%s664 + $0x10] sm:$0xff]
        %v668 = vld [vmem:[%s664 + $0x18] sm:$0xff]
        %v669 = vld [vmem:[%s664 + $0x20] sm:$0xff]
        %v670 = vld [vmem:[%s664 + $0x28] sm:$0xff]
        %v671 = vld [vmem:[%s664 + $0x30] sm:$0xff]
        %v672 = vld [vmem:[%s664 + $0x38] sm:$0xff]
        %v673 = vld [vmem:[%s664 + $0x40] sm:$0xff]
        %v674 = vld [vmem:[%s664 + $0x48] sm:$0xff]
        %v675 = vld [vmem:[%s664 + $0x50] sm:$0xff]
        %v676 = vld [vmem:[%s664 + $0x58] sm:$0xff]
        %v677 = vld [vmem:[%s664 + $0x60] sm:$0xff]
        %v678 = vld [vmem:[%s664 + $0x68] sm:$0xff]
        %v679 = vld [vmem:[%s664 + $0x70] sm:$0xff]
        %v680 = vld [vmem:[%s664 + $0x78] sm:$0xff]
        %vm681 = vcmask 1044480
        %v682 = vrot.slane %v577, 3
        %v683 = vrot.slane %v580, 3
        %v684 = vsel %vm681, %v682, %v683
        %687 = vmatpush.msra.mxu0 %v680
        %688 = vmatpush.msra.mxu0 %v679
        %689 = vmatpush.msra.mxu0 %v678
        %690 = vmatpush.msra.mxu0 %v677
        %691 = vmatpush.msra.mxu0 %v676
        %692 = vmatpush.msra.mxu0 %v675
        %693 = vmatpush.msra.mxu0 %v674
        %694 = vmatpush.msra.mxu0 %v673
        %695 = vmatpush.msra.mxu0 %v672
        %696 = vmatpush.msra.mxu0 %v671
        %697 = vmatpush.msra.mxu0 %v670
        %698 = vmatpush.msra.mxu0 %v669
        %699 = vmatpush.msra.mxu0 %v668
        %700 = vmatpush.msra.mxu0 %v667
        %701 = vmatpush.msra.mxu0 %v666
        %702 = vmatpush.msra.mxu0 %v665
        %703 = vmatmul.f32.gmra.mxu0 %v684
        %v704 = vpop.f32.mrf.mxu0
        %v705 = vadd.f32 0.0, %v704
        %706 = vmatmul.f32.gmra.mxu0 %v683
        %v707 = vpop.f32.mrf.mxu0
        %v708 = vadd.f32 0.0, %v707
        %709 = vdwg.mxu0
        %s710 = scalar_lea.vmem [#allocation2], 1152
        %v711 = vld [vmem:[%s710] sm:$0xff]
        %v712 = vld [vmem:[%s710 + $0x8] sm:$0xff]
        %v713 = vld [vmem:[%s710 + $0x10] sm:$0xff]
        %v714 = vld [vmem:[%s710 + $0x18] sm:$0xff]
        %v715 = vld [vmem:[%s710 + $0x20] sm:$0xff]
        %v716 = vld [vmem:[%s710 + $0x28] sm:$0xff]
        %v717 = vld [vmem:[%s710 + $0x30] sm:$0xff]
        %v718 = vld [vmem:[%s710 + $0x38] sm:$0xff]
        %v719 = vld [vmem:[%s710 + $0x40] sm:$0xff]
        %v720 = vld [vmem:[%s710 + $0x48] sm:$0xff]
        %v721 = vld [vmem:[%s710 + $0x50] sm:$0xff]
        %v722 = vld [vmem:[%s710 + $0x58] sm:$0xff]
        %v723 = vld [vmem:[%s710 + $0x60] sm:$0xff]
        %v724 = vld [vmem:[%s710 + $0x68] sm:$0xff]
        %v725 = vld [vmem:[%s710 + $0x70] sm:$0xff]
        %v726 = vld [vmem:[%s710 + $0x78] sm:$0xff]
        %v727 = vrot.slane %v577, 4
        %v728 = vrot.slane %v580, 4
        %v729 = vsel %vm555, %v727, %v728
        %732 = vmatpush.msra.mxu0 %v726
        %733 = vmatpush.msra.mxu0 %v725
        %734 = vmatpush.msra.mxu0 %v724
        %735 = vmatpush.msra.mxu0 %v723
        %736 = vmatpush.msra.mxu0 %v722
        %737 = vmatpush.msra.mxu0 %v721
        %738 = vmatpush.msra.mxu0 %v720
        %739 = vmatpush.msra.mxu0 %v719
        %740 = vmatpush.msra.mxu0 %v718
        %741 = vmatpush.msra.mxu0 %v717
        %742 = vmatpush.msra.mxu0 %v716
        %743 = vmatpush.msra.mxu0 %v715
        %744 = vmatpush.msra.mxu0 %v714
        %745 = vmatpush.msra.mxu0 %v713
        %746 = vmatpush.msra.mxu0 %v712
        %747 = vmatpush.msra.mxu0 %v711
        %748 = vmatmul.f32.gmra.mxu0 %v729
        %v749 = vpop.f32.mrf.mxu0
        %v750 = vadd.f32 0.0, %v749
        %751 = vmatmul.f32.gmra.mxu0 %v728
        %v752 = vpop.f32.mrf.mxu0
        %v753 = vadd.f32 0.0, %v752
        %754 = vdwg.mxu0
        %755 = vmatpush.msra.mxu0 %v598
        %756 = vmatpush.msra.mxu0 %v597
        %757 = vmatpush.msra.mxu0 %v596
        %758 = vmatpush.msra.mxu0 %v595
        %759 = vmatpush.msra.mxu0 %v594
        %760 = vmatpush.msra.mxu0 %v593
        %761 = vmatpush.msra.mxu0 %v592
        %762 = vmatpush.msra.mxu0 %v591
        %763 = vmatpush.msra.mxu0 %v590
        %764 = vmatpush.msra.mxu0 %v589
        %765 = vmatpush.msra.mxu0 %v588
        %766 = vmatpush.msra.mxu0 %v587
        %767 = vmatpush.msra.mxu0 %v586
        %768 = vmatpush.msra.mxu0 %v585
        %769 = vmatpush.msra.mxu0 %v584
        %770 = vmatpush.msra.mxu0 %v583
        %771 = vmatmul.f32.gmra.mxu0 %v577
        %v772 = vpop.f32.mrf.mxu0
        %v773 = vadd.f32 %v642, %v772
        %774 = vmatmul.f32.gmra.mxu0 %v580
        %v775 = vpop.f32.mrf.mxu0
        %v776 = vadd.f32 %v645, %v775
        %777 = vdwg.mxu0
        %vm778 = vcmask 1045504
        %v779 = vrot.slane %v577, 2
        %v780 = vrot.slane %v580, 2
        %v781 = vsel %vm778, %v779, %v780
        %784 = vmatpush.msra.mxu0 %v663
        %785 = vmatpush.msra.mxu0 %v662
        %786 = vmatpush.msra.mxu0 %v661
        %787 = vmatpush.msra.mxu0 %v660
        %788 = vmatpush.msra.mxu0 %v659
        %789 = vmatpush.msra.mxu0 %v658
        %790 = vmatpush.msra.mxu0 %v657
        %791 = vmatpush.msra.mxu0 %v656
        %792 = vmatpush.msra.mxu0 %v655
        %793 = vmatpush.msra.mxu0 %v654
        %794 = vmatpush.msra.mxu0 %v653
        %795 = vmatpush.msra.mxu0 %v652
        %796 = vmatpush.msra.mxu0 %v651
        %797 = vmatpush.msra.mxu0 %v650
        %798 = vmatpush.msra.mxu0 %v649
        %799 = vmatpush.msra.mxu0 %v648
        %800 = vmatmul.f32.gmra.mxu0 %v781
        %v801 = vpop.f32.mrf.mxu0
        %v802 = vadd.f32 %v705, %v801
        %803 = vmatmul.f32.gmra.mxu0 %v780
        %v804 = vpop.f32.mrf.mxu0
        %v805 = vadd.f32 %v708, %v804
        %806 = vdwg.mxu0
        %v807 = vadd.f32 %v773, %v802
        %v808 = vadd.f32 %v776, %v805
        %v809 = vadd.f32 %v807, %v750
        %v810 = vadd.f32 %v808, %v753
        %v811 = vld [vmem:[#allocation8] sm:$0x1f]
        %v812 = vld [vmem:[#allocation5 + $0x1] sm:$0x1]
        %v813 = vperm.slane %v812, 0
        %vm814 = vcmask 80896
        %v816 = vsel %vm814, %v811, 0
        %vm818 = vcmask 1041408
        %v820 = vsel %vm818, %v810, 0
        %822 = vmatpush.msra.mxu0 0.0
        %823 = vmatpush.msra.mxu0 0.0
        %824 = vmatpush.msra.mxu0 0.0
        %825 = vmatpush.msra.mxu0 0.0
        %826 = vmatpush.msra.mxu0 0.0
        %827 = vmatpush.msra.mxu0 0.0
        %828 = vmatpush.msra.mxu0 0.0
        %829 = vmatpush.msra.mxu0 0.0
        %830 = vmatpush.msra.mxu0 0.0
        %831 = vmatpush.msra.mxu0 0.0
        %832 = vmatpush.msra.mxu0 0.0
        %833 = vmatpush.msra.mxu0 0.0
        %834 = vmatpush.msra.mxu0 0.0
        %835 = vmatpush.msra.mxu0 0.0
        %836 = vmatpush.msra.mxu0 %v820
        %837 = vmatpush.msra.mxu0 %v809
        %838 = vmatmul.f32.gmra.mxu0 %v816
        %v839 = vpop.f32.mrf.mxu0
        %v840 = vadd.f32 %v813, %v839
        %841 = vdwg.mxu0
        %s842 = scalar_lea.vmem [#allocation2], 1280
        %v843 = vld [vmem:[%s842] sm:$0xff]
        %v844 = vld [vmem:[%s842 + $0x8] sm:$0xff]
        %v845 = vld [vmem:[%s842 + $0x10] sm:$0xff]
        %v846 = vld [vmem:[%s842 + $0x18] sm:$0xff]
        %v847 = vld [vmem:[%s842 + $0x20] sm:$0xff]
        %v848 = vld [vmem:[%s842 + $0x28] sm:$0xff]
        %v849 = vld [vmem:[%s842 + $0x30] sm:$0xff]
        %v850 = vld [vmem:[%s842 + $0x38] sm:$0xff]
        %v851 = vld [vmem:[%s842 + $0x40] sm:$0xff]
        %v852 = vld [vmem:[%s842 + $0x48] sm:$0xff]
        %v853 = vld [vmem:[%s842 + $0x50] sm:$0xff]
        %v854 = vld [vmem:[%s842 + $0x58] sm:$0xff]
        %v855 = vld [vmem:[%s842 + $0x60] sm:$0xff]
        %v856 = vld [vmem:[%s842 + $0x68] sm:$0xff]
        %v857 = vld [vmem:[%s842 + $0x70] sm:$0xff]
        %v858 = vld [vmem:[%s842 + $0x78] sm:$0xff]
        %s859 = scalar_lea.vmem [#allocation2], 1408
        %v860 = vld [vmem:[%s859] sm:$0xff]
        %v861 = vld [vmem:[%s859 + $0x8] sm:$0xff]
        %v862 = vld [vmem:[%s859 + $0x10] sm:$0xff]
        %v863 = vld [vmem:[%s859 + $0x18] sm:$0xff]
        %v864 = vld [vmem:[%s859 + $0x20] sm:$0xff]
        %v865 = vld [vmem:[%s859 + $0x28] sm:$0xff]
        %v866 = vld [vmem:[%s859 + $0x30] sm:$0xff]
        %v867 = vld [vmem:[%s859 + $0x38] sm:$0xff]
        %v868 = vld [vmem:[%s859 + $0x40] sm:$0xff]
        %v869 = vld [vmem:[%s859 + $0x48] sm:$0xff]
        %v870 = vld [vmem:[%s859 + $0x50] sm:$0xff]
        %v871 = vld [vmem:[%s859 + $0x58] sm:$0xff]
        %v872 = vld [vmem:[%s859 + $0x60] sm:$0xff]
        %v873 = vld [vmem:[%s859 + $0x68] sm:$0xff]
        %v874 = vld [vmem:[%s859 + $0x70] sm:$0xff]
        %v875 = vld [vmem:[%s859 + $0x78] sm:$0xff]
        %v877 = vrot.slane %v840, 1
        %879 = vmatpush.msra.mxu0 %v875
        %880 = vmatpush.msra.mxu0 %v874
        %881 = vmatpush.msra.mxu0 %v873
        %882 = vmatpush.msra.mxu0 %v872
        %883 = vmatpush.msra.mxu0 %v871
        %884 = vmatpush.msra.mxu0 %v870
        %885 = vmatpush.msra.mxu0 %v869
        %886 = vmatpush.msra.mxu0 %v868
        %887 = vmatpush.msra.mxu0 %v867
        %888 = vmatpush.msra.mxu0 %v866
        %889 = vmatpush.msra.mxu0 %v865
        %890 = vmatpush.msra.mxu0 %v864
        %891 = vmatpush.msra.mxu0 %v863
        %892 = vmatpush.msra.mxu0 %v862
        %893 = vmatpush.msra.mxu0 %v861
        %894 = vmatpush.msra.mxu0 %v860
        %895 = vmatmul.f32.gmra.mxu0 %v877
        %v896 = vpop.f32.mrf.mxu0
        %v897 = vadd.f32 0.0, %v896
        %898 = vdwg.mxu0
        %s899 = scalar_lea.vmem [#allocation2], 1536
        %v900 = vld [vmem:[%s899] sm:$0xff]
        %v901 = vld [vmem:[%s899 + $0x8] sm:$0xff]
        %v902 = vld [vmem:[%s899 + $0x10] sm:$0xff]
        %v903 = vld [vmem:[%s899 + $0x18] sm:$0xff]
        %v904 = vld [vmem:[%s899 + $0x20] sm:$0xff]
        %v905 = vld [vmem:[%s899 + $0x28] sm:$0xff]
        %v906 = vld [vmem:[%s899 + $0x30] sm:$0xff]
        %v907 = vld [vmem:[%s899 + $0x38] sm:$0xff]
        %v908 = vld [vmem:[%s899 + $0x40] sm:$0xff]
        %v909 = vld [vmem:[%s899 + $0x48] sm:$0xff]
        %v910 = vld [vmem:[%s899 + $0x50] sm:$0xff]
        %v911 = vld [vmem:[%s899 + $0x58] sm:$0xff]
        %v912 = vld [vmem:[%s899 + $0x60] sm:$0xff]
        %v913 = vld [vmem:[%s899 + $0x68] sm:$0xff]
        %v914 = vld [vmem:[%s899 + $0x70] sm:$0xff]
        %v915 = vld [vmem:[%s899 + $0x78] sm:$0xff]
        %s916 = scalar_lea.vmem [#allocation2], 1664
        %v917 = vld [vmem:[%s916] sm:$0xff]
        %v918 = vld [vmem:[%s916 + $0x8] sm:$0xff]
        %v919 = vld [vmem:[%s916 + $0x10] sm:$0xff]
        %v920 = vld [vmem:[%s916 + $0x18] sm:$0xff]
        %v921 = vld [vmem:[%s916 + $0x20] sm:$0xff]
        %v922 = vld [vmem:[%s916 + $0x28] sm:$0xff]
        %v923 = vld [vmem:[%s916 + $0x30] sm:$0xff]
        %v924 = vld [vmem:[%s916 + $0x38] sm:$0xff]
        %v925 = vld [vmem:[%s916 + $0x40] sm:$0xff]
        %v926 = vld [vmem:[%s916 + $0x48] sm:$0xff]
        %v927 = vld [vmem:[%s916 + $0x50] sm:$0xff]
        %v928 = vld [vmem:[%s916 + $0x58] sm:$0xff]
        %v929 = vld [vmem:[%s916 + $0x60] sm:$0xff]
        %v930 = vld [vmem:[%s916 + $0x68] sm:$0xff]
        %v931 = vld [vmem:[%s916 + $0x70] sm:$0xff]
        %v932 = vld [vmem:[%s916 + $0x78] sm:$0xff]
        %v933 = vrot.slane %v840, 3
        %935 = vmatpush.msra.mxu0 %v932
        %936 = vmatpush.msra.mxu0 %v931
        %937 = vmatpush.msra.mxu0 %v930
        %938 = vmatpush.msra.mxu0 %v929
        %939 = vmatpush.msra.mxu0 %v928
        %940 = vmatpush.msra.mxu0 %v927
        %941 = vmatpush.msra.mxu0 %v926
        %942 = vmatpush.msra.mxu0 %v925
        %943 = vmatpush.msra.mxu0 %v924
        %944 = vmatpush.msra.mxu0 %v923
        %945 = vmatpush.msra.mxu0 %v922
        %946 = vmatpush.msra.mxu0 %v921
        %947 = vmatpush.msra.mxu0 %v920
        %948 = vmatpush.msra.mxu0 %v919
        %949 = vmatpush.msra.mxu0 %v918
        %950 = vmatpush.msra.mxu0 %v917
        %951 = vmatmul.f32.gmra.mxu0 %v933
        %v952 = vpop.f32.mrf.mxu0
        %v953 = vadd.f32 0.0, %v952
        %954 = vdwg.mxu0
        %s955 = scalar_lea.vmem [#allocation2], 1792
        %v956 = vld [vmem:[%s955] sm:$0xff]
        %v957 = vld [vmem:[%s955 + $0x8] sm:$0xff]
        %v958 = vld [vmem:[%s955 + $0x10] sm:$0xff]
        %v959 = vld [vmem:[%s955 + $0x18] sm:$0xff]
        %v960 = vld [vmem:[%s955 + $0x20] sm:$0xff]
        %v961 = vld [vmem:[%s955 + $0x28] sm:$0xff]
        %v962 = vld [vmem:[%s955 + $0x30] sm:$0xff]
        %v963 = vld [vmem:[%s955 + $0x38] sm:$0xff]
        %v964 = vld [vmem:[%s955 + $0x40] sm:$0xff]
        %v965 = vld [vmem:[%s955 + $0x48] sm:$0xff]
        %v966 = vld [vmem:[%s955 + $0x50] sm:$0xff]
        %v967 = vld [vmem:[%s955 + $0x58] sm:$0xff]
        %v968 = vld [vmem:[%s955 + $0x60] sm:$0xff]
        %v969 = vld [vmem:[%s955 + $0x68] sm:$0xff]
        %v970 = vld [vmem:[%s955 + $0x70] sm:$0xff]
        %v971 = vld [vmem:[%s955 + $0x78] sm:$0xff]
        %v972 = vrot.slane %v840, 4
        %974 = vmatpush.msra.mxu0 %v971
        %975 = vmatpush.msra.mxu0 %v970
        %976 = vmatpush.msra.mxu0 %v969
        %977 = vmatpush.msra.mxu0 %v968
        %978 = vmatpush.msra.mxu0 %v967
        %979 = vmatpush.msra.mxu0 %v966
        %980 = vmatpush.msra.mxu0 %v965
        %981 = vmatpush.msra.mxu0 %v964
        %982 = vmatpush.msra.mxu0 %v963
        %983 = vmatpush.msra.mxu0 %v962
        %984 = vmatpush.msra.mxu0 %v961
        %985 = vmatpush.msra.mxu0 %v960
        %986 = vmatpush.msra.mxu0 %v959
        %987 = vmatpush.msra.mxu0 %v958
        %988 = vmatpush.msra.mxu0 %v957
        %989 = vmatpush.msra.mxu0 %v956
        %990 = vmatmul.f32.gmra.mxu0 %v972
        %v991 = vpop.f32.mrf.mxu0
        %v992 = vadd.f32 0.0, %v991
        %993 = vdwg.mxu0
        %994 = vmatpush.msra.mxu0 %v858
        %995 = vmatpush.msra.mxu0 %v857
        %996 = vmatpush.msra.mxu0 %v856
        %997 = vmatpush.msra.mxu0 %v855
        %998 = vmatpush.msra.mxu0 %v854
        %999 = vmatpush.msra.mxu0 %v853
        %1000 = vmatpush.msra.mxu0 %v852
        %1001 = vmatpush.msra.mxu0 %v851
        %1002 = vmatpush.msra.mxu0 %v850
        %1003 = vmatpush.msra.mxu0 %v849
        %1004 = vmatpush.msra.mxu0 %v848
        %1005 = vmatpush.msra.mxu0 %v847
        %1006 = vmatpush.msra.mxu0 %v846
        %1007 = vmatpush.msra.mxu0 %v845
        %1008 = vmatpush.msra.mxu0 %v844
        %1009 = vmatpush.msra.mxu0 %v843
        %1010 = vmatmul.f32.gmra.mxu0 %v840
        %v1011 = vpop.f32.mrf.mxu0
        %v1012 = vadd.f32 %v897, %v1011
        %1013 = vdwg.mxu0
        %v1014 = vrot.slane %v840, 2
        %1016 = vmatpush.msra.mxu0 %v915
        %1017 = vmatpush.msra.mxu0 %v914
        %1018 = vmatpush.msra.mxu0 %v913
        %1019 = vmatpush.msra.mxu0 %v912
        %1020 = vmatpush.msra.mxu0 %v911
        %1021 = vmatpush.msra.mxu0 %v910
        %1022 = vmatpush.msra.mxu0 %v909
        %1023 = vmatpush.msra.mxu0 %v908
        %1024 = vmatpush.msra.mxu0 %v907
        %1025 = vmatpush.msra.mxu0 %v906
        %1026 = vmatpush.msra.mxu0 %v905
        %1027 = vmatpush.msra.mxu0 %v904
        %1028 = vmatpush.msra.mxu0 %v903
        %1029 = vmatpush.msra.mxu0 %v902
        %1030 = vmatpush.msra.mxu0 %v901
        %1031 = vmatpush.msra.mxu0 %v900
        %1032 = vmatmul.f32.gmra.mxu0 %v1014
        %v1033 = vpop.f32.mrf.mxu0
        %v1034 = vadd.f32 %v953, %v1033
        %1035 = vdwg.mxu0
        %v1036 = vadd.f32 %v1012, %v1034
        %v1037 = vadd.f32 %v1036, %v992
        %v1038 = vld [vmem:[#allocation5 + $0x2] sm:$0x1]
        %v1039 = vadd.f32 %v1037, %v1038
        %v1040 = vmax.f32 %v1039, 0.0
        %s1041 = scalar_lea.vmem [#allocation2], 1920
        %v1042 = vld [vmem:[%s1041] sm:$0xff]
        %v1043 = vld [vmem:[%s1041 + $0x8] sm:$0xff]
        %v1044 = vld [vmem:[%s1041 + $0x10] sm:$0xff]
        %v1045 = vld [vmem:[%s1041 + $0x18] sm:$0xff]
        %v1046 = vld [vmem:[%s1041 + $0x20] sm:$0xff]
        %v1047 = vld [vmem:[%s1041 + $0x28] sm:$0xff]
        %v1048 = vld [vmem:[%s1041 + $0x30] sm:$0xff]
        %v1049 = vld [vmem:[%s1041 + $0x38] sm:$0xff]
        %v1050 = vld [vmem:[%s1041 + $0x40] sm:$0xff]
        %v1051 = vld [vmem:[%s1041 + $0x48] sm:$0xff]
        %v1052 = vld [vmem:[%s1041 + $0x50] sm:$0xff]
        %v1053 = vld [vmem:[%s1041 + $0x58] sm:$0xff]
        %v1054 = vld [vmem:[%s1041 + $0x60] sm:$0xff]
        %v1055 = vld [vmem:[%s1041 + $0x68] sm:$0xff]
        %v1056 = vld [vmem:[%s1041 + $0x70] sm:$0xff]
        %v1057 = vld [vmem:[%s1041 + $0x78] sm:$0xff]
        %v1058 = vld [vmem:[#allocation5 + $0x3] sm:$0x1]
        %1059 = vmatpush.msra.mxu0 %v1057
        %1060 = vmatpush.msra.mxu0 %v1056
        %1061 = vmatpush.msra.mxu0 %v1055
        %1062 = vmatpush.msra.mxu0 %v1054
        %1063 = vmatpush.msra.mxu0 %v1053
        %1064 = vmatpush.msra.mxu0 %v1052
        %1065 = vmatpush.msra.mxu0 %v1051
        %1066 = vmatpush.msra.mxu0 %v1050
        %1067 = vmatpush.msra.mxu0 %v1049
        %1068 = vmatpush.msra.mxu0 %v1048
        %1069 = vmatpush.msra.mxu0 %v1047
        %1070 = vmatpush.msra.mxu0 %v1046
        %1071 = vmatpush.msra.mxu0 %v1045
        %1072 = vmatpush.msra.mxu0 %v1044
        %1073 = vmatpush.msra.mxu0 %v1043
        %1074 = vmatpush.msra.mxu0 %v1042
        %1075 = vmatmul.f32.gmra.mxu0 %v1040
        %v1076 = vpop.f32.mrf.mxu0
        %v1077 = vadd.f32 %v1058, %v1076
        %1078 = vdwg.mxu0
        %v1079 = vmax.f32 %v1077, 0.0
        %s1080 = scalar_lea.vmem [#allocation2], 2048
        %v1081 = vld [vmem:[%s1080] sm:$0xff]
        %v1082 = vld [vmem:[%s1080 + $0x8] sm:$0xff]
        %v1083 = vld [vmem:[%s1080 + $0x10] sm:$0xff]
        %v1084 = vld [vmem:[%s1080 + $0x18] sm:$0xff]
        %v1085 = vld [vmem:[%s1080 + $0x20] sm:$0xff]
        %v1086 = vld [vmem:[%s1080 + $0x28] sm:$0xff]
        %v1087 = vld [vmem:[%s1080 + $0x30] sm:$0xff]
        %v1088 = vld [vmem:[%s1080 + $0x38] sm:$0xff]
        %v1089 = vld [vmem:[%s1080 + $0x40] sm:$0xff]
        %v1090 = vld [vmem:[%s1080 + $0x48] sm:$0xff]
        %v1091 = vld [vmem:[%s1080 + $0x50] sm:$0xff]
        %v1092 = vld [vmem:[%s1080 + $0x58] sm:$0xff]
        %v1093 = vld [vmem:[%s1080 + $0x60] sm:$0xff]
        %v1094 = vld [vmem:[%s1080 + $0x68] sm:$0xff]
        %v1095 = vld [vmem:[%s1080 + $0x70] sm:$0xff]
        %v1096 = vld [vmem:[%s1080 + $0x78] sm:$0xff]
        %v1097 = vld [vmem:[#allocation5 + $0x4] sm:$0x1]
        %1098 = vmatpush.msra.mxu0 %v1096
        %1099 = vmatpush.msra.mxu0 %v1095
        %1100 = vmatpush.msra.mxu0 %v1094
        %1101 = vmatpush.msra.mxu0 %v1093
        %1102 = vmatpush.msra.mxu0 %v1092
        %1103 = vmatpush.msra.mxu0 %v1091
        %1104 = vmatpush.msra.mxu0 %v1090
        %1105 = vmatpush.msra.mxu0 %v1089
        %1106 = vmatpush.msra.mxu0 %v1088
        %1107 = vmatpush.msra.mxu0 %v1087
        %1108 = vmatpush.msra.mxu0 %v1086
        %1109 = vmatpush.msra.mxu0 %v1085
        %1110 = vmatpush.msra.mxu0 %v1084
        %1111 = vmatpush.msra.mxu0 %v1083
        %1112 = vmatpush.msra.mxu0 %v1082
        %1113 = vmatpush.msra.mxu0 %v1081
        %1114 = vmatmul.f32.gmra.mxu0 %v1079
        %v1115 = vpop.f32.mrf.mxu0
        %v1116 = vadd.f32 %v1097, %v1115
        %1117 = vdwg.mxu0
        %1118 = vst [vmem:[%s280] sm:$0x1] %v1116
        %s1119 = sand.u32 %s140, 1
        %s1120 = scalar_lea.sflag [#allocation4], %s1119
        %s1121 = sand.u32 %s140, 1
        %s1122 = scalar_lea.vmem [#allocation10], %s1121
        // Predicated region
        $region57: #{lenet_forward_pallas.1} parent=39 // pred_check
          %p1123 = pneg %p150
        $region58: #{lenet_forward_pallas.1} parent=39 // pred_check_branch
          %1125 = sbr.rel (%p1123) target = $region60
        $region59: #{lenet_forward_pallas.1} parent=39 // pred_region
          %1127 = vsyncadd %s1120, 0
          %s1128 = scalar_lea.hbm %s5, %s22
          %s1130 = sshll.u32 %s1122, 4
          %s1131 = int_to_ptr.vmem [resolvable:$true] %s1130
          %s1132 = sshll.u32 %s1128, 4
          %s1133 = int_to_ptr.hbm [resolvable:$true] %s1132
          %1135 = dma.vmem_to_hbm [thread:$0]  %s1131, 16, %s1133, %s1120
        $region60: #{lenet_forward_pallas.1} parent=39 // pred_fallthru
          _
      $region40: #{lenet_forward_pallas.1} parent=5 // pred_fallthru
        _
      %p1136 = scmp.le.s32.totalorder 2, %s17
      // Predicated region
      $region61: #{lenet_forward_pallas.1} parent=5 // pred_check
        %p1137 = pneg %p1136
      $region62: #{lenet_forward_pallas.1} parent=5 // pred_check_branch
        %1139 = sbr.rel (%p1137) target = $region64
      $region63: #{lenet_forward_pallas.1} parent=5 // pred_region
        %s1140 = ssub.s32 %s17, 2
        // Predicated region
        $region65: #{lenet_forward_pallas.1} parent=63 // pred_check
          %p1141 = pneg %p156
        $region66: #{lenet_forward_pallas.1} parent=63 // pred_check_branch
          %1143 = sbr.rel (%p1141) target = $region68
        $region67: #{lenet_forward_pallas.1} parent=63 // pred_region
          %s1144 = sand.u32 %s141, 1
          %s1145 = scalar_lea.sflag [#allocation4], %s1144
          %s1146 = sand.u32 %s141, 1
          %s1147 = scalar_lea.vmem [#allocation10], %s1146
          %1149 = dma.done %s1145, 16
        $region68: #{lenet_forward_pallas.1} parent=63 // pred_fallthru
          _
      $region64: #{lenet_forward_pallas.1} parent=5 // pred_fallthru
        _
    $region6: #{lenet_forward_pallas.1} parent=1 // loop_footer
      %s21 = sadd.s32 1, %s17
    $region7: #{lenet_forward_pallas.1} parent=1 // loop_footer_branch
      %16 = sbr.rel target = $region3
    $region8: #{lenet_forward_pallas.1} parent=1 // loop_exit
      _
    %1150 = vsyncpa [#allocation3], 1
    %s1151 = scalar_lea.sflag [#allocation3], 1
    %1152 = vsyncpa %s1151, 1
    %1153 = vsyncpa [#allocation6], 1
    %1154 = vsyncpa [#allocation9], 1
    %1155 = vsyncpa [#allocation4], 1
    %s1156 = scalar_lea.sflag [#allocation4], 1
    %1157 = vsyncpa %s1156, 1

</llo_original>
